<compile_context>
chip_gen: v7x
topology: tpu7x:2x2x1
jax: 0.10.0
libtpu: 0.0.40
codegen_flags: <defaults>
</compile_context>

<pallas_src>
import functools

import jax
import jax.numpy as jnp
import numpy as np
from jax.experimental import pallas as pl
from jax.experimental.pallas import tpu as pltpu


def _make_tap_masks(H, W):
    """Precompute the 9 SAME-padding border masks, shape (9, 1, H*W) float32.

    mask[t, 0, h*W+w] == 1.0  iff (h + dh - 1, w + dw - 1) is inside the image,
    where t = dh*3 + dw.  Computed host-side with numpy (static in H, W)."""
    hh, ww = np.meshgrid(np.arange(H), np.arange(W), indexing="ij")
    hh = hh.reshape(-1)
    ww = ww.reshape(-1)
    m = np.zeros((9, 1, H * W), np.float32)
    for t in range(9):
        dh, dw = divmod(t, 3)
        ok_h = (hh + dh - 1 >= 0) & (hh + dh - 1 <= H - 1)
        ok_w = (ww + dw - 1 >= 0) & (ww + dw - 1 <= W - 1)
        m[t, 0, :] = (ok_h & ok_w).astype(np.float32)
    return jnp.asarray(m)


def _block_kernel(x_ref, w1_ref, b1_ref, w2_ref, b2_ref, mask_ref, o_ref, *,
                  H, W, Cin, Cmid, Cout):
    # x_ref    : (1, Cin, M)      one image, channels on sublanes, H*W on lanes
    # w1_ref   : (9, Cmid, Cin)   conv1 weights, one (Cmid, Cin) matrix per tap
    # b1_ref   : (Cmid, 1)
    # w2_ref   : (9, Cout, Cmid)
    # b2_ref   : (Cout, 1)
    # mask_ref : (9, 1, M)        0/1 border masks (SAME padding), per tap
    # o_ref    : (1, Cout, M)     channels-major, lane-dense output
    M = H * W
    x = x_ref[0]                                          # (Cin, M) f32

    def conv3x3_relu(inp, w_ref, b_ref, c_out):
        # inp: (c_in, M); returns relu(conv3x3_same(inp) + b), shape (c_out, M).
        acc = jnp.zeros((c_out, M), jnp.float32)
        for t in range(9):
            dh, dw = divmod(t, 3)
            s = (dh - 1) * W + (dw - 1)                   # static flat shift
            if s == 0:
                shifted = inp                             # center tap
            else:
                # shifted[:, m] = inp[:, (m + s) % M]  (wrap killed by the mask)
                shifted = pltpu.roll(inp, shift=(-s) % M, axis=1)
            if not (dh == 1 and dw == 1):
                shifted = shifted * mask_ref[t]           # (1, M) bcast over sublanes
            # (c_out, c_in) @ (c_in, M) -> (c_out, M); M on the MXU minor dim.
            acc = acc + jnp.dot(w_ref[t], shifted,
                                preferred_element_type=jnp.float32)
        return jnp.maximum(acc + b_ref[...], 0.0)         # bias (c_out,1) broadcast

    a1 = conv3x3_relu(x, w1_ref, b1_ref, Cmid)            # (Cmid, M)
    out = conv3x3_relu(a1, w2_ref, b2_ref, Cout)          # (Cout, M)
    o_ref[0] = out.astype(o_ref.dtype)                    # lane-dense store


def block_forward(x_nchw, w1, b1, w2, b2):
    """Forward pass of `Block` (batch_norm=False).

    x_nchw : (B, Cin, H, W) float32
    w1     : (Cmid, Cin, 3, 3)   PyTorch Conv2d weight layout
    b1     : (Cmid,)
    w2     : (Cout, Cmid, 3, 3)
    b2     : (Cout,)
    returns (B, Cout, H, W) float32
    """
    B, Cin, H, W = x_nchw.shape
    Cmid = w1.shape[0]
    Cout = w2.shape[0]
    M = H * W

    # Pure reshapes only -- no wrapper transposes on activations.
    x_flat = x_nchw.reshape(B, Cin, M).astype(jnp.float32)

    # (Co, Ci, 3, 3) -> (3, 3, Co, Ci) -> (9, Co, Ci): tap-major weight matrices.
    w1_taps = jnp.transpose(w1, (2, 3, 0, 1)).reshape(9, Cmid, Cin).astype(jnp.float32)
    w2_taps = jnp.transpose(w2, (2, 3, 0, 1)).reshape(9, Cout, Cmid).astype(jnp.float32)
    b1_col = b1.reshape(Cmid, 1).astype(jnp.float32)
    b2_col = b2.reshape(Cout, 1).astype(jnp.float32)
    masks = _make_tap_masks(H, W)                         # (9, 1, M)

    kernel = functools.partial(_block_kernel, H=H, W=W,
                               Cin=Cin, Cmid=Cmid, Cout=Cout)

    flops = 2 * B * M * 9 * (Cin * Cmid + Cmid * Cout)
    bytes_accessed = 4 * (B * M * (Cin + Cout)
                          + 9 * (Cin * Cmid + Cmid * Cout)
                          + Cmid + Cout + 9 * M)

    out_flat = pl.pallas_call(
        kernel,
        out_shape=jax.ShapeDtypeStruct((B, Cout, M), jnp.float32),
        grid_spec=pltpu.PrefetchScalarGridSpec(
            num_scalar_prefetch=0,
            grid=(B,),
            in_specs=[
                pl.BlockSpec((1, Cin, M), lambda b: (b, 0, 0)),
                pl.BlockSpec((9, Cmid, Cin), lambda b: (0, 0, 0)),
                pl.BlockSpec((Cmid, 1), lambda b: (0, 0)),
                pl.BlockSpec((9, Cout, Cmid), lambda b: (0, 0, 0)),
                pl.BlockSpec((Cout, 1), lambda b: (0, 0)),
                pl.BlockSpec((9, 1, M), lambda b: (0, 0, 0)),
            ],
            out_specs=pl.BlockSpec((1, Cout, M), lambda b: (b, 0, 0)),
        ),
        compiler_params=pltpu.CompilerParams(
            dimension_semantics=("parallel",),
        ),
        cost_estimate=pl.CostEstimate(flops=flops, transcendentals=0,
                                      bytes_accessed=bytes_accessed),
    )(x_flat, w1_taps, b1_col, w2_taps, b2_col, masks)

    # (B, Cout, H*W) -> (B, Cout, H, W): pure reshape, no transpose.
    return out_flat.reshape(B, Cout, H, W)


def _reference_forward(x_nchw, w1, b1, w2, b2):
    """Pure-JAX reference (NCHW, same semantics as the PyTorch module)."""
    dn = jax.lax.conv_dimension_numbers(x_nchw.shape, w1.shape,
                                        ("NCHW", "OIHW", "NCHW"))
    y = jax.lax.conv_general_dilated(x_nchw, w1, (1, 1), "SAME",
                                     dimension_numbers=dn)
    y = jnp.maximum(y + b1[None, :, None, None], 0.0)
    dn2 = jax.lax.conv_dimension_numbers(y.shape, w2.shape,
                                         ("NCHW", "OIHW", "NCHW"))
    z = jax.lax.conv_general_dilated(y, w2, (1, 1), "SAME",
                                     dimension_numbers=dn2)
    z = jnp.maximum(z + b2[None, :, None, None], 0.0)
    return z


if __name__ == "__main__":
    # Small shapes consistent with the module: batch=2, in=4, mid=8, out=4, 16x16 spatial
    B, Cin, Cmid, Cout, H, W = 2, 4, 8, 4, 16, 16

    key = jax.random.PRNGKey(0)
    kx, kw1, kb1, kw2, kb2 = jax.random.split(key, 5)

    x = jax.random.normal(kx, (B, Cin, H, W), dtype=jnp.float32)
    w1 = jax.random.normal(kw1, (Cmid, Cin, 3, 3), dtype=jnp.float32) * 0.1
    b1 = jax.random.normal(kb1, (Cmid,), dtype=jnp.float32) * 0.1
    w2 = jax.random.normal(kw2, (Cout, Cmid, 3, 3), dtype=jnp.float32) * 0.1
    b2 = jax.random.normal(kb2, (Cout,), dtype=jnp.float32) * 0.1

    out = block_forward(x, w1, b1, w2, b2)
    out = jax.block_until_ready(out)

    ref = jax.block_until_ready(_reference_forward(x, w1, b1, w2, b2))
    np.testing.assert_allclose(np.asarray(out), np.asarray(ref),
                               rtol=1e-4, atol=1e-4)

    print("KERNEL_OK")
</pallas_src>

<mosaic_0001>
module attributes {stable_mosaic.version = 11 : i64} {
  func.func @_block_kernel(%arg0: i32, %arg1: memref<1x4x256xf32, #tpu.memory_space<vmem>>, %arg2: memref<9x8x4xf32, #tpu.memory_space<vmem>>, %arg3: memref<8x1xf32, #tpu.memory_space<vmem>>, %arg4: memref<9x4x8xf32, #tpu.memory_space<vmem>>, %arg5: memref<4x1xf32, #tpu.memory_space<vmem>>, %arg6: memref<9x1x256xf32, #tpu.memory_space<vmem>>, %arg7: memref<1x4x256xf32, #tpu.memory_space<vmem>>) attributes {dimension_semantics = [#tpu.dimension_semantics<parallel>], iteration_bounds = array<i64: 2>, scalar_prefetch = 0 : i64, scratch_operands = 0 : i64, tpu.core_type = #tpu.core_type<tc>, window_params = [{transform_indices = @transform_0, window_bounds = array<i64: 1, 4, 256>}, {pipeline_mode = #tpu.pipeline_mode<synchronous>, transform_indices = @transform_1, window_bounds = array<i64: 9, 8, 4>}, {pipeline_mode = #tpu.pipeline_mode<synchronous>, transform_indices = @transform_2, window_bounds = array<i64: 8, 1>}, {pipeline_mode = #tpu.pipeline_mode<synchronous>, transform_indices = @transform_3, window_bounds = array<i64: 9, 4, 8>}, {pipeline_mode = #tpu.pipeline_mode<synchronous>, transform_indices = @transform_4, window_bounds = array<i64: 4, 1>}, {pipeline_mode = #tpu.pipeline_mode<synchronous>, transform_indices = @transform_5, window_bounds = array<i64: 9, 1, 256>}, {transform_indices = @transform_6, window_bounds = array<i64: 1, 4, 256>}]} {
    %c0 = arith.constant 0 : index
    %c0_0 = arith.constant 0 : index
    %c0_1 = arith.constant 0 : index
    %0 = vector.load %arg1[%c0, %c0_0, %c0_1] : memref<1x4x256xf32, #tpu.memory_space<vmem>>, vector<1x4x256xf32>
    %1 = vector.shape_cast %0 : vector<1x4x256xf32> to vector<4x256xf32>
    %cst = arith.constant 0.000000e+00 : f32
    %2 = vector.broadcast %cst : f32 to vector<8x256xf32>
    %c17_i32 = arith.constant 17 : i32
    %3 = tpu.dynamic_rotate %1 by %c17_i32 dim 1 : vector<4x256xf32>, i32 -> vector<4x256xf32>
    %c0_2 = arith.constant 0 : index
    %c0_3 = arith.constant 0 : index
    %c0_4 = arith.constant 0 : index
    %4 = vector.load %arg6[%c0_2, %c0_3, %c0_4] : memref<9x1x256xf32, #tpu.memory_space<vmem>>, vector<1x1x256xf32>
    %5 = vector.shape_cast %4 : vector<1x1x256xf32> to vector<1x256xf32>
    %6 = vector.broadcast %5 : vector<1x256xf32> to vector<4x256xf32>
    %7 = arith.mulf %3, %6 : vector<4x256xf32>
    %c0_5 = arith.constant 0 : index
    %c0_6 = arith.constant 0 : index
    %c0_7 = arith.constant 0 : index
    %8 = vector.load %arg2[%c0_5, %c0_6, %c0_7] : memref<9x8x4xf32, #tpu.memory_space<vmem>>, vector<1x8x4xf32>
    %9 = vector.shape_cast %8 : vector<1x8x4xf32> to vector<8x4xf32>
    %cst_8 = arith.constant dense<0.000000e+00> : vector<8x256xf32>
    %10 = tpu.matmul %9, %7, %cst_8 {dimension_numbers = #tpu.dot_dimension_numbers<[1], [0], [0], [1], [0, 0, 1, 1], [], []>} : vector<8x4xf32>, vector<4x256xf32>, vector<8x256xf32> -> vector<8x256xf32>
    %11 = arith.addf %2, %10 : vector<8x256xf32>
    %c16_i32 = arith.constant 16 : i32
    %12 = tpu.dynamic_rotate %1 by %c16_i32 dim 1 : vector<4x256xf32>, i32 -> vector<4x256xf32>
    %c1 = arith.constant 1 : index
    %c0_9 = arith.constant 0 : index
    %c0_10 = arith.constant 0 : index
    %13 = vector.load %arg6[%c1, %c0_9, %c0_10] : memref<9x1x256xf32, #tpu.memory_space<vmem>>, vector<1x1x256xf32>
    %14 = vector.shape_cast %13 : vector<1x1x256xf32> to vector<1x256xf32>
    %15 = vector.broadcast %14 : vector<1x256xf32> to vector<4x256xf32>
    %16 = arith.mulf %12, %15 : vector<4x256xf32>
    %c1_11 = arith.constant 1 : index
    %c0_12 = arith.constant 0 : index
    %c0_13 = arith.constant 0 : index
    %17 = vector.load %arg2[%c1_11, %c0_12, %c0_13] : memref<9x8x4xf32, #tpu.memory_space<vmem>>, vector<1x8x4xf32>
    %18 = vector.shape_cast %17 : vector<1x8x4xf32> to vector<8x4xf32>
    %cst_14 = arith.constant dense<0.000000e+00> : vector<8x256xf32>
    %19 = tpu.matmul %18, %16, %cst_14 {dimension_numbers = #tpu.dot_dimension_numbers<[1], [0], [0], [1], [0, 0, 1, 1], [], []>} : vector<8x4xf32>, vector<4x256xf32>, vector<8x256xf32> -> vector<8x256xf32>
    %20 = arith.addf %11, %19 : vector<8x256xf32>
    %c15_i32 = arith.constant 15 : i32
    %21 = tpu.dynamic_rotate %1 by %c15_i32 dim 1 : vector<4x256xf32>, i32 -> vector<4x256xf32>
    %c2 = arith.constant 2 : index
    %c0_15 = arith.constant 0 : index
    %c0_16 = arith.constant 0 : index
    %22 = vector.load %arg6[%c2, %c0_15, %c0_16] : memref<9x1x256xf32, #tpu.memory_space<vmem>>, vector<1x1x256xf32>
    %23 = vector.shape_cast %22 : vector<1x1x256xf32> to vector<1x256xf32>
    %24 = vector.broadcast %23 : vector<1x256xf32> to vector<4x256xf32>
    %25 = arith.mulf %21, %24 : vector<4x256xf32>
    %c2_17 = arith.constant 2 : index
    %c0_18 = arith.constant 0 : index
    %c0_19 = arith.constant 0 : index
    %26 = vector.load %arg2[%c2_17, %c0_18, %c0_19] : memref<9x8x4xf32, #tpu.memory_space<vmem>>, vector<1x8x4xf32>
    %27 = vector.shape_cast %26 : vector<1x8x4xf32> to vector<8x4xf32>
    %cst_20 = arith.constant dense<0.000000e+00> : vector<8x256xf32>
    %28 = tpu.matmul %27, %25, %cst_20 {dimension_numbers = #tpu.dot_dimension_numbers<[1], [0], [0], [1], [0, 0, 1, 1], [], []>} : vector<8x4xf32>, vector<4x256xf32>, vector<8x256xf32> -> vector<8x256xf32>
    %29 = arith.addf %20, %28 : vector<8x256xf32>
    %c1_i32 = arith.constant 1 : i32
    %30 = tpu.dynamic_rotate %1 by %c1_i32 dim 1 : vector<4x256xf32>, i32 -> vector<4x256xf32>
    %c3 = arith.constant 3 : index
    %c0_21 = arith.constant 0 : index
    %c0_22 = arith.constant 0 : index
    %31 = vector.load %arg6[%c3, %c0_21, %c0_22] : memref<9x1x256xf32, #tpu.memory_space<vmem>>, vector<1x1x256xf32>
    %32 = vector.shape_cast %31 : vector<1x1x256xf32> to vector<1x256xf32>
    %33 = vector.broadcast %32 : vector<1x256xf32> to vector<4x256xf32>
    %34 = arith.mulf %30, %33 : vector<4x256xf32>
    %c3_23 = arith.constant 3 : index
    %c0_24 = arith.constant 0 : index
    %c0_25 = arith.constant 0 : index
    %35 = vector.load %arg2[%c3_23, %c0_24, %c0_25] : memref<9x8x4xf32, #tpu.memory_space<vmem>>, vector<1x8x4xf32>
    %36 = vector.shape_cast %35 : vector<1x8x4xf32> to vector<8x4xf32>
    %cst_26 = arith.constant dense<0.000000e+00> : vector<8x256xf32>
    %37 = tpu.matmul %36, %34, %cst_26 {dimension_numbers = #tpu.dot_dimension_numbers<[1], [0], [0], [1], [0, 0, 1, 1], [], []>} : vector<8x4xf32>, vector<4x256xf32>, vector<8x256xf32> -> vector<8x256xf32>
    %38 = arith.addf %29, %37 : vector<8x256xf32>
    %c4 = arith.constant 4 : index
    %c0_27 = arith.constant 0 : index
    %c0_28 = arith.constant 0 : index
    %39 = vector.load %arg2[%c4, %c0_27, %c0_28] : memref<9x8x4xf32, #tpu.memory_space<vmem>>, vector<1x8x4xf32>
    %40 = vector.shape_cast %39 : vector<1x8x4xf32> to vector<8x4xf32>
    %cst_29 = arith.constant dense<0.000000e+00> : vector<8x256xf32>
    %41 = tpu.matmul %40, %1, %cst_29 {dimension_numbers = #tpu.dot_dimension_numbers<[1], [0], [0], [1], [0, 0, 1, 1], [], []>} : vector<8x4xf32>, vector<4x256xf32>, vector<8x256xf32> -> vector<8x256xf32>
    %42 = arith.addf %38, %41 : vector<8x256xf32>
    %c255_i32 = arith.constant 255 : i32
    %43 = tpu.dynamic_rotate %1 by %c255_i32 dim 1 : vector<4x256xf32>, i32 -> vector<4x256xf32>
    %c5 = arith.constant 5 : index
    %c0_30 = arith.constant 0 : index
    %c0_31 = arith.constant 0 : index
    %44 = vector.load %arg6[%c5, %c0_30, %c0_31] : memref<9x1x256xf32, #tpu.memory_space<vmem>>, vector<1x1x256xf32>
    %45 = vector.shape_cast %44 : vector<1x1x256xf32> to vector<1x256xf32>
    %46 = vector.broadcast %45 : vector<1x256xf32> to vector<4x256xf32>
    %47 = arith.mulf %43, %46 : vector<4x256xf32>
    %c5_32 = arith.constant 5 : index
    %c0_33 = arith.constant 0 : index
    %c0_34 = arith.constant 0 : index
    %48 = vector.load %arg2[%c5_32, %c0_33, %c0_34] : memref<9x8x4xf32, #tpu.memory_space<vmem>>, vector<1x8x4xf32>
    %49 = vector.shape_cast %48 : vector<1x8x4xf32> to vector<8x4xf32>
    %cst_35 = arith.constant dense<0.000000e+00> : vector<8x256xf32>
    %50 = tpu.matmul %49, %47, %cst_35 {dimension_numbers = #tpu.dot_dimension_numbers<[1], [0], [0], [1], [0, 0, 1, 1], [], []>} : vector<8x4xf32>, vector<4x256xf32>, vector<8x256xf32> -> vector<8x256xf32>
    %51 = arith.addf %42, %50 : vector<8x256xf32>
    %c241_i32 = arith.constant 241 : i32
    %52 = tpu.dynamic_rotate %1 by %c241_i32 dim 1 : vector<4x256xf32>, i32 -> vector<4x256xf32>
    %c6 = arith.constant 6 : index
    %c0_36 = arith.constant 0 : index
    %c0_37 = arith.constant 0 : index
    %53 = vector.load %arg6[%c6, %c0_36, %c0_37] : memref<9x1x256xf32, #tpu.memory_space<vmem>>, vector<1x1x256xf32>
    %54 = vector.shape_cast %53 : vector<1x1x256xf32> to vector<1x256xf32>
    %55 = vector.broadcast %54 : vector<1x256xf32> to vector<4x256xf32>
    %56 = arith.mulf %52, %55 : vector<4x256xf32>
    %c6_38 = arith.constant 6 : index
    %c0_39 = arith.constant 0 : index
    %c0_40 = arith.constant 0 : index
    %57 = vector.load %arg2[%c6_38, %c0_39, %c0_40] : memref<9x8x4xf32, #tpu.memory_space<vmem>>, vector<1x8x4xf32>
    %58 = vector.shape_cast %57 : vector<1x8x4xf32> to vector<8x4xf32>
    %cst_41 = arith.constant dense<0.000000e+00> : vector<8x256xf32>
    %59 = tpu.matmul %58, %56, %cst_41 {dimension_numbers = #tpu.dot_dimension_numbers<[1], [0], [0], [1], [0, 0, 1, 1], [], []>} : vector<8x4xf32>, vector<4x256xf32>, vector<8x256xf32> -> vector<8x256xf32>
    %60 = arith.addf %51, %59 : vector<8x256xf32>
    %c240_i32 = arith.constant 240 : i32
    %61 = tpu.dynamic_rotate %1 by %c240_i32 dim 1 : vector<4x256xf32>, i32 -> vector<4x256xf32>
    %c7 = arith.constant 7 : index
    %c0_42 = arith.constant 0 : index
    %c0_43 = arith.constant 0 : index
    %62 = vector.load %arg6[%c7, %c0_42, %c0_43] : memref<9x1x256xf32, #tpu.memory_space<vmem>>, vector<1x1x256xf32>
    %63 = vector.shape_cast %62 : vector<1x1x256xf32> to vector<1x256xf32>
    %64 = vector.broadcast %63 : vector<1x256xf32> to vector<4x256xf32>
    %65 = arith.mulf %61, %64 : vector<4x256xf32>
    %c7_44 = arith.constant 7 : index
    %c0_45 = arith.constant 0 : index
    %c0_46 = arith.constant 0 : index
    %66 = vector.load %arg2[%c7_44, %c0_45, %c0_46] : memref<9x8x4xf32, #tpu.memory_space<vmem>>, vector<1x8x4xf32>
    %67 = vector.shape_cast %66 : vector<1x8x4xf32> to vector<8x4xf32>
    %cst_47 = arith.constant dense<0.000000e+00> : vector<8x256xf32>
    %68 = tpu.matmul %67, %65, %cst_47 {dimension_numbers = #tpu.dot_dimension_numbers<[1], [0], [0], [1], [0, 0, 1, 1], [], []>} : vector<8x4xf32>, vector<4x256xf32>, vector<8x256xf32> -> vector<8x256xf32>
    %69 = arith.addf %60, %68 : vector<8x256xf32>
    %c239_i32 = arith.constant 239 : i32
    %70 = tpu.dynamic_rotate %1 by %c239_i32 dim 1 : vector<4x256xf32>, i32 -> vector<4x256xf32>
    %c8 = arith.constant 8 : index
    %c0_48 = arith.constant 0 : index
    %c0_49 = arith.constant 0 : index
    %71 = vector.load %arg6[%c8, %c0_48, %c0_49] : memref<9x1x256xf32, #tpu.memory_space<vmem>>, vector<1x1x256xf32>
    %72 = vector.shape_cast %71 : vector<1x1x256xf32> to vector<1x256xf32>
    %73 = vector.broadcast %72 : vector<1x256xf32> to vector<4x256xf32>
    %74 = arith.mulf %70, %73 : vector<4x256xf32>
    %c8_50 = arith.constant 8 : index
    %c0_51 = arith.constant 0 : index
    %c0_52 = arith.constant 0 : index
    %75 = vector.load %arg2[%c8_50, %c0_51, %c0_52] : memref<9x8x4xf32, #tpu.memory_space<vmem>>, vector<1x8x4xf32>
    %76 = vector.shape_cast %75 : vector<1x8x4xf32> to vector<8x4xf32>
    %cst_53 = arith.constant dense<0.000000e+00> : vector<8x256xf32>
    %77 = tpu.matmul %76, %74, %cst_53 {dimension_numbers = #tpu.dot_dimension_numbers<[1], [0], [0], [1], [0, 0, 1, 1], [], []>} : vector<8x4xf32>, vector<4x256xf32>, vector<8x256xf32> -> vector<8x256xf32>
    %78 = arith.addf %69, %77 : vector<8x256xf32>
    %c0_54 = arith.constant 0 : index
    %c0_55 = arith.constant 0 : index
    %79 = vector.load %arg3[%c0_54, %c0_55] : memref<8x1xf32, #tpu.memory_space<vmem>>, vector<8x1xf32>
    %80 = vector.broadcast %79 : vector<8x1xf32> to vector<8x256xf32>
    %81 = arith.addf %78, %80 : vector<8x256xf32>
    %cst_56 = arith.constant 0.000000e+00 : f32
    %82 = vector.broadcast %cst_56 : f32 to vector<8x256xf32>
    %83 = arith.maximumf %81, %82 : vector<8x256xf32>
    %cst_57 = arith.constant 0.000000e+00 : f32
    %84 = vector.broadcast %cst_57 : f32 to vector<4x256xf32>
    %c17_i32_58 = arith.constant 17 : i32
    %85 = tpu.dynamic_rotate %83 by %c17_i32_58 dim 1 : vector<8x256xf32>, i32 -> vector<8x256xf32>
    %c0_59 = arith.constant 0 : index
    %c0_60 = arith.constant 0 : index
    %c0_61 = arith.constant 0 : index
    %86 = vector.load %arg6[%c0_59, %c0_60, %c0_61] : memref<9x1x256xf32, #tpu.memory_space<vmem>>, vector<1x1x256xf32>
    %87 = vector.shape_cast %86 : vector<1x1x256xf32> to vector<1x256xf32>
    %88 = vector.broadcast %87 : vector<1x256xf32> to vector<8x256xf32>
    %89 = arith.mulf %85, %88 : vector<8x256xf32>
    %c0_62 = arith.constant 0 : index
    %c0_63 = arith.constant 0 : index
    %c0_64 = arith.constant 0 : index
    %90 = vector.load %arg4[%c0_62, %c0_63, %c0_64] : memref<9x4x8xf32, #tpu.memory_space<vmem>>, vector<1x4x8xf32>
    %91 = vector.shape_cast %90 : vector<1x4x8xf32> to vector<4x8xf32>
    %cst_65 = arith.constant dense<0.000000e+00> : vector<4x256xf32>
    %92 = tpu.matmul %91, %89, %cst_65 {dimension_numbers = #tpu.dot_dimension_numbers<[1], [0], [0], [1], [0, 0, 1, 1], [], []>} : vector<4x8xf32>, vector<8x256xf32>, vector<4x256xf32> -> vector<4x256xf32>
    %93 = arith.addf %84, %92 : vector<4x256xf32>
    %c16_i32_66 = arith.constant 16 : i32
    %94 = tpu.dynamic_rotate %83 by %c16_i32_66 dim 1 : vector<8x256xf32>, i32 -> vector<8x256xf32>
    %c1_67 = arith.constant 1 : index
    %c0_68 = arith.constant 0 : index
    %c0_69 = arith.constant 0 : index
    %95 = vector.load %arg6[%c1_67, %c0_68, %c0_69] : memref<9x1x256xf32, #tpu.memory_space<vmem>>, vector<1x1x256xf32>
    %96 = vector.shape_cast %95 : vector<1x1x256xf32> to vector<1x256xf32>
    %97 = vector.broadcast %96 : vector<1x256xf32> to vector<8x256xf32>
    %98 = arith.mulf %94, %97 : vector<8x256xf32>
    %c1_70 = arith.constant 1 : index
    %c0_71 = arith.constant 0 : index
    %c0_72 = arith.constant 0 : index
    %99 = vector.load %arg4[%c1_70, %c0_71, %c0_72] : memref<9x4x8xf32, #tpu.memory_space<vmem>>, vector<1x4x8xf32>
    %100 = vector.shape_cast %99 : vector<1x4x8xf32> to vector<4x8xf32>
    %cst_73 = arith.constant dense<0.000000e+00> : vector<4x256xf32>
    %101 = tpu.matmul %100, %98, %cst_73 {dimension_numbers = #tpu.dot_dimension_numbers<[1], [0], [0], [1], [0, 0, 1, 1], [], []>} : vector<4x8xf32>, vector<8x256xf32>, vector<4x256xf32> -> vector<4x256xf32>
    %102 = arith.addf %93, %101 : vector<4x256xf32>
    %c15_i32_74 = arith.constant 15 : i32
    %103 = tpu.dynamic_rotate %83 by %c15_i32_74 dim 1 : vector<8x256xf32>, i32 -> vector<8x256xf32>
    %c2_75 = arith.constant 2 : index
    %c0_76 = arith.constant 0 : index
    %c0_77 = arith.constant 0 : index
    %104 = vector.load %arg6[%c2_75, %c0_76, %c0_77] : memref<9x1x256xf32, #tpu.memory_space<vmem>>, vector<1x1x256xf32>
    %105 = vector.shape_cast %104 : vector<1x1x256xf32> to vector<1x256xf32>
    %106 = vector.broadcast %105 : vector<1x256xf32> to vector<8x256xf32>
    %107 = arith.mulf %103, %106 : vector<8x256xf32>
    %c2_78 = arith.constant 2 : index
    %c0_79 = arith.constant 0 : index
    %c0_80 = arith.constant 0 : index
    %108 = vector.load %arg4[%c2_78, %c0_79, %c0_80] : memref<9x4x8xf32, #tpu.memory_space<vmem>>, vector<1x4x8xf32>
    %109 = vector.shape_cast %108 : vector<1x4x8xf32> to vector<4x8xf32>
    %cst_81 = arith.constant dense<0.000000e+00> : vector<4x256xf32>
    %110 = tpu.matmul %109, %107, %cst_81 {dimension_numbers = #tpu.dot_dimension_numbers<[1], [0], [0], [1], [0, 0, 1, 1], [], []>} : vector<4x8xf32>, vector<8x256xf32>, vector<4x256xf32> -> vector<4x256xf32>
    %111 = arith.addf %102, %110 : vector<4x256xf32>
    %c1_i32_82 = arith.constant 1 : i32
    %112 = tpu.dynamic_rotate %83 by %c1_i32_82 dim 1 : vector<8x256xf32>, i32 -> vector<8x256xf32>
    %c3_83 = arith.constant 3 : index
    %c0_84 = arith.constant 0 : index
    %c0_85 = arith.constant 0 : index
    %113 = vector.load %arg6[%c3_83, %c0_84, %c0_85] : memref<9x1x256xf32, #tpu.memory_space<vmem>>, vector<1x1x256xf32>
    %114 = vector.shape_cast %113 : vector<1x1x256xf32> to vector<1x256xf32>
    %115 = vector.broadcast %114 : vector<1x256xf32> to vector<8x256xf32>
    %116 = arith.mulf %112, %115 : vector<8x256xf32>
    %c3_86 = arith.constant 3 : index
    %c0_87 = arith.constant 0 : index
    %c0_88 = arith.constant 0 : index
    %117 = vector.load %arg4[%c3_86, %c0_87, %c0_88] : memref<9x4x8xf32, #tpu.memory_space<vmem>>, vector<1x4x8xf32>
    %118 = vector.shape_cast %117 : vector<1x4x8xf32> to vector<4x8xf32>
    %cst_89 = arith.constant dense<0.000000e+00> : vector<4x256xf32>
    %119 = tpu.matmul %118, %116, %cst_89 {dimension_numbers = #tpu.dot_dimension_numbers<[1], [0], [0], [1], [0, 0, 1, 1], [], []>} : vector<4x8xf32>, vector<8x256xf32>, vector<4x256xf32> -> vector<4x256xf32>
    %120 = arith.addf %111, %119 : vector<4x256xf32>
    %c4_90 = arith.constant 4 : index
    %c0_91 = arith.constant 0 : index
    %c0_92 = arith.constant 0 : index
    %121 = vector.load %arg4[%c4_90, %c0_91, %c0_92] : memref<9x4x8xf32, #tpu.memory_space<vmem>>, vector<1x4x8xf32>
    %122 = vector.shape_cast %121 : vector<1x4x8xf32> to vector<4x8xf32>
    %cst_93 = arith.constant dense<0.000000e+00> : vector<4x256xf32>
    %123 = tpu.matmul %122, %83, %cst_93 {dimension_numbers = #tpu.dot_dimension_numbers<[1], [0], [0], [1], [0, 0, 1, 1], [], []>} : vector<4x8xf32>, vector<8x256xf32>, vector<4x256xf32> -> vector<4x256xf32>
    %124 = arith.addf %120, %123 : vector<4x256xf32>
    %c255_i32_94 = arith.constant 255 : i32
    %125 = tpu.dynamic_rotate %83 by %c255_i32_94 dim 1 : vector<8x256xf32>, i32 -> vector<8x256xf32>
    %c5_95 = arith.constant 5 : index
    %c0_96 = arith.constant 0 : index
    %c0_97 = arith.constant 0 : index
    %126 = vector.load %arg6[%c5_95, %c0_96, %c0_97] : memref<9x1x256xf32, #tpu.memory_space<vmem>>, vector<1x1x256xf32>
    %127 = vector.shape_cast %126 : vector<1x1x256xf32> to vector<1x256xf32>
    %128 = vector.broadcast %127 : vector<1x256xf32> to vector<8x256xf32>
    %129 = arith.mulf %125, %128 : vector<8x256xf32>
    %c5_98 = arith.constant 5 : index
    %c0_99 = arith.constant 0 : index
    %c0_100 = arith.constant 0 : index
    %130 = vector.load %arg4[%c5_98, %c0_99, %c0_100] : memref<9x4x8xf32, #tpu.memory_space<vmem>>, vector<1x4x8xf32>
    %131 = vector.shape_cast %130 : vector<1x4x8xf32> to vector<4x8xf32>
    %cst_101 = arith.constant dense<0.000000e+00> : vector<4x256xf32>
    %132 = tpu.matmul %131, %129, %cst_101 {dimension_numbers = #tpu.dot_dimension_numbers<[1], [0], [0], [1], [0, 0, 1, 1], [], []>} : vector<4x8xf32>, vector<8x256xf32>, vector<4x256xf32> -> vector<4x256xf32>
    %133 = arith.addf %124, %132 : vector<4x256xf32>
    %c241_i32_102 = arith.constant 241 : i32
    %134 = tpu.dynamic_rotate %83 by %c241_i32_102 dim 1 : vector<8x256xf32>, i32 -> vector<8x256xf32>
    %c6_103 = arith.constant 6 : index
    %c0_104 = arith.constant 0 : index
    %c0_105 = arith.constant 0 : index
    %135 = vector.load %arg6[%c6_103, %c0_104, %c0_105] : memref<9x1x256xf32, #tpu.memory_space<vmem>>, vector<1x1x256xf32>
    %136 = vector.shape_cast %135 : vector<1x1x256xf32> to vector<1x256xf32>
    %137 = vector.broadcast %136 : vector<1x256xf32> to vector<8x256xf32>
    %138 = arith.mulf %134, %137 : vector<8x256xf32>
    %c6_106 = arith.constant 6 : index
    %c0_107 = arith.constant 0 : index
    %c0_108 = arith.constant 0 : index
    %139 = vector.load %arg4[%c6_106, %c0_107, %c0_108] : memref<9x4x8xf32, #tpu.memory_space<vmem>>, vector<1x4x8xf32>
    %140 = vector.shape_cast %139 : vector<1x4x8xf32> to vector<4x8xf32>
    %cst_109 = arith.constant dense<0.000000e+00> : vector<4x256xf32>
    %141 = tpu.matmul %140, %138, %cst_109 {dimension_numbers = #tpu.dot_dimension_numbers<[1], [0], [0], [1], [0, 0, 1, 1], [], []>} : vector<4x8xf32>, vector<8x256xf32>, vector<4x256xf32> -> vector<4x256xf32>
    %142 = arith.addf %133, %141 : vector<4x256xf32>
    %c240_i32_110 = arith.constant 240 : i32
    %143 = tpu.dynamic_rotate %83 by %c240_i32_110 dim 1 : vector<8x256xf32>, i32 -> vector<8x256xf32>
    %c7_111 = arith.constant 7 : index
    %c0_112 = arith.constant 0 : index
    %c0_113 = arith.constant 0 : index
    %144 = vector.load %arg6[%c7_111, %c0_112, %c0_113] : memref<9x1x256xf32, #tpu.memory_space<vmem>>, vector<1x1x256xf32>
    %145 = vector.shape_cast %144 : vector<1x1x256xf32> to vector<1x256xf32>
    %146 = vector.broadcast %145 : vector<1x256xf32> to vector<8x256xf32>
    %147 = arith.mulf %143, %146 : vector<8x256xf32>
    %c7_114 = arith.constant 7 : index
    %c0_115 = arith.constant 0 : index
    %c0_116 = arith.constant 0 : index
    %148 = vector.load %arg4[%c7_114, %c0_115, %c0_116] : memref<9x4x8xf32, #tpu.memory_space<vmem>>, vector<1x4x8xf32>
    %149 = vector.shape_cast %148 : vector<1x4x8xf32> to vector<4x8xf32>
    %cst_117 = arith.constant dense<0.000000e+00> : vector<4x256xf32>
    %150 = tpu.matmul %149, %147, %cst_117 {dimension_numbers = #tpu.dot_dimension_numbers<[1], [0], [0], [1], [0, 0, 1, 1], [], []>} : vector<4x8xf32>, vector<8x256xf32>, vector<4x256xf32> -> vector<4x256xf32>
    %151 = arith.addf %142, %150 : vector<4x256xf32>
    %c239_i32_118 = arith.constant 239 : i32
    %152 = tpu.dynamic_rotate %83 by %c239_i32_118 dim 1 : vector<8x256xf32>, i32 -> vector<8x256xf32>
    %c8_119 = arith.constant 8 : index
    %c0_120 = arith.constant 0 : index
    %c0_121 = arith.constant 0 : index
    %153 = vector.load %arg6[%c8_119, %c0_120, %c0_121] : memref<9x1x256xf32, #tpu.memory_space<vmem>>, vector<1x1x256xf32>
    %154 = vector.shape_cast %153 : vector<1x1x256xf32> to vector<1x256xf32>
    %155 = vector.broadcast %154 : vector<1x256xf32> to vector<8x256xf32>
    %156 = arith.mulf %152, %155 : vector<8x256xf32>
    %c8_122 = arith.constant 8 : index
    %c0_123 = arith.constant 0 : index
    %c0_124 = arith.constant 0 : index
    %157 = vector.load %arg4[%c8_122, %c0_123, %c0_124] : memref<9x4x8xf32, #tpu.memory_space<vmem>>, vector<1x4x8xf32>
    %158 = vector.shape_cast %157 : vector<1x4x8xf32> to vector<4x8xf32>
    %cst_125 = arith.constant dense<0.000000e+00> : vector<4x256xf32>
    %159 = tpu.matmul %158, %156, %cst_125 {dimension_numbers = #tpu.dot_dimension_numbers<[1], [0], [0], [1], [0, 0, 1, 1], [], []>} : vector<4x8xf32>, vector<8x256xf32>, vector<4x256xf32> -> vector<4x256xf32>
    %160 = arith.addf %151, %159 : vector<4x256xf32>
    %c0_126 = arith.constant 0 : index
    %c0_127 = arith.constant 0 : index
    %161 = vector.load %arg5[%c0_126, %c0_127] : memref<4x1xf32, #tpu.memory_space<vmem>>, vector<4x1xf32>
    %162 = vector.broadcast %161 : vector<4x1xf32> to vector<4x256xf32>
    %163 = arith.addf %160, %162 : vector<4x256xf32>
    %cst_128 = arith.constant 0.000000e+00 : f32
    %164 = vector.broadcast %cst_128 : f32 to vector<4x256xf32>
    %165 = arith.maximumf %163, %164 : vector<4x256xf32>
    %c0_129 = arith.constant 0 : index
    %c0_130 = arith.constant 0 : index
    %c0_131 = arith.constant 0 : index
    %166 = vector.load %arg7[%c0_129, %c0_130, %c0_131] : memref<1x4x256xf32, #tpu.memory_space<vmem>>, vector<1x4x256xf32>
    %167 = vector.shape_cast %166 : vector<1x4x256xf32> to vector<4x256xf32>
    %168 = vector.shape_cast %165 : vector<4x256xf32> to vector<1x4x256xf32>
    tpu.vector_store %arg7[%c0_129, %c0_130, %c0_131], %168 {strides = array<i32>} : memref<1x4x256xf32, #tpu.memory_space<vmem>>, vector<1x4x256xf32>,
    return
  }
  func.func @transform_0(%arg0: i32) -> (i32, i32, i32) {
    %c0_i32 = arith.constant 0 : i32
    %c0_i32_0 = arith.constant 0 : i32
    %c0_i32_1 = arith.constant 0 : i32
    return %arg0, %c0_i32, %c0_i32_0 : i32, i32, i32
  }
  func.func @transform_1(%arg0: i32) -> (i32, i32, i32) {
    %c0_i32 = arith.constant 0 : i32
    %c0_i32_0 = arith.constant 0 : i32
    %c0_i32_1 = arith.constant 0 : i32
    %c0_i32_2 = arith.constant 0 : i32
    return %c0_i32, %c0_i32_0, %c0_i32_1 : i32, i32, i32
  }
  func.func @transform_2(%arg0: i32) -> (i32, i32) {
    %c0_i32 = arith.constant 0 : i32
    %c0_i32_0 = arith.constant 0 : i32
    %c0_i32_1 = arith.constant 0 : i32
    return %c0_i32, %c0_i32_0 : i32, i32
  }
  func.func @transform_3(%arg0: i32) -> (i32, i32, i32) {
    %c0_i32 = arith.constant 0 : i32
    %c0_i32_0 = arith.constant 0 : i32
    %c0_i32_1 = arith.constant 0 : i32
    %c0_i32_2 = arith.constant 0 : i32
    return %c0_i32, %c0_i32_0, %c0_i32_1 : i32, i32, i32
  }
  func.func @transform_4(%arg0: i32) -> (i32, i32) {
    %c0_i32 = arith.constant 0 : i32
    %c0_i32_0 = arith.constant 0 : i32
    %c0_i32_1 = arith.constant 0 : i32
    return %c0_i32, %c0_i32_0 : i32, i32
  }
  func.func @transform_5(%arg0: i32) -> (i32, i32, i32) {
    %c0_i32 = arith.constant 0 : i32
    %c0_i32_0 = arith.constant 0 : i32
    %c0_i32_1 = arith.constant 0 : i32
    %c0_i32_2 = arith.constant 0 : i32
    return %c0_i32, %c0_i32_0, %c0_i32_1 : i32, i32, i32
  }
  func.func @transform_6(%arg0: i32) -> (i32, i32, i32) {
    %c0_i32 = arith.constant 0 : i32
    %c0_i32_0 = arith.constant 0 : i32
    %c0_i32_1 = arith.constant 0 : i32
    return %arg0, %c0_i32, %c0_i32_0 : i32, i32, i32
  }
}

</mosaic_0001>

<llo_original>
// kernel: tpu_custom_call.1
$region0: #{tpu_custom_call.1}
  #allocation0 [shape = 'u32[]', space=smem, size = 0x4, offset = 0x4, fixed_abs, tag = 'smem constant byte address 0x4 - core index']
  #allocation1 [shape = 'u32[144,128]{1,0:T(1,128)}', space=vmem, size = 0x12000, scoped, tag = 'internal scratch']
  %s0 = inlined_call_operand.vmem [shape: f32[2,4,256], index: 0, kind: input, shape index: {}]
  %s1 = inlined_call_operand.vmem [shape: f32[9,8,4], index: 1, kind: input, shape index: {}]
  %s2 = inlined_call_operand.vmem [shape: f32[8,1], index: 2, kind: input, shape index: {}]
  %s3 = inlined_call_operand.vmem [shape: f32[9,4,8], index: 3, kind: input, shape index: {}]
  %s4 = inlined_call_operand.vmem [shape: f32[4,1], index: 4, kind: input, shape index: {}]
  %s5 = inlined_call_operand.vmem [shape: f32[9,1,256], index: 5, kind: input, shape index: {}]
  %s6 = inlined_call_operand.hbm [shape: f32[2,4,256], index: 6, kind: output, shape index: {}]
  %s7 = sld [smem:[#allocation0]]
  $region57: #{tpu_custom_call.1} parent=0
    _
  %s9 = ssub.s32 1, %s7
  %s10 = scalar_select 0, %s9, %s7
  $region1: #{tpu_custom_call.1} parent=0
    #allocation2 [shape = 'u8[8192]{0}', space=vmem, size = 0x2000, scoped, tag = 'output window, operand 0']
    #allocation3 [shape = 's32[2]{0}', space=sflag, size = 0x8, scoped, tag = 'scoped memory for tpu_custom_call.1']
    %11 = vsyncpa [#allocation3], 0
    %s12 = scalar_lea.sflag [#allocation3], 1
    %13 = vsyncpa %s12, 0
    loop: start=0, step=1, limit=4
    $region2: #{tpu_custom_call.1} parent=1 // loop_pre_header
      _
    $region3: #{tpu_custom_call.1} parent=1 // loop_header
      %s15 = sphi 0, %s19
      %p16 = scmp.ge.s32.totalorder %s15, 4
      %s25 = sphi 0, %s27
      %s28 = sphi 0, %s25
      %s29 = sphi 0, %s28
      %s45 = sphi 0, %s29
      %s49 = sphi 0, %s49
      %s51 = sphi 0, %s49
      %s52 = sphi 0, %s51
      %s66 = sphi 0, %s52
      %s70 = sphi 0, %s70
      %s72 = sphi 0, %s70
      %s73 = sphi 0, %s72
      %s87 = sphi 0, %s73
      %s91 = sphi 0, %s91
      %s93 = sphi 0, %s91
      %s94 = sphi 0, %s93
      %s108 = sphi 0, %s94
      %s112 = sphi 0, %s112
      %s114 = sphi 0, %s112
      %s115 = sphi 0, %s114
      %s129 = sphi 0, %s115
      %s133 = sphi 0, %s133
      %s135 = sphi 0, %s133
      %s136 = sphi 0, %s135
      %s150 = sphi 0, %s136
      %s156 = sphi 0, %s158
      %s159 = sphi 0, %s156
      %s160 = sphi 0, %s159
      %s176 = sphi 0, %s160
    $region4: #{tpu_custom_call.1} parent=1 // loop_header_branch
      %18 = sbr.rel (%p16) target = $region8
    $region5: #{tpu_custom_call.1} parent=1 // loop_body
      %s20 = ssub.s32 %s15, 1
      %s21 = ssub.s32 %s15, 2
      %s22 = sadd.s32 %s15, 1
      %s23 = ssub.s32 %s15, %s22
      %p24 = scmp.eq.s32.totalorder %s23, 0
      %s26 = sadd.s32 %s25, 1
      %s27 = scalar_select %p24, %s25, %s26
      %p30 = pneg %p24
      %p31 = scmp.eq.s32.totalorder %s15, 1
      %p32 = por %p30, %p31
      %p33 = scmp.ne.s32.totalorder %s25, %s28
      %p34 = scmp.eq.s32.totalorder %s15, 0
      %p35 = por %p33, %p34
      %p36 = scmp.ne.s32.totalorder %s25, %s28
      %p37 = scmp.eq.s32.totalorder %s20, 1
      %p38 = por %p36, %p37
      %p39 = scmp.ne.s32.totalorder %s28, %s29
      %p40 = scmp.eq.s32.totalorder %s20, 0
      %p41 = por %p39, %p40
      %p42 = scmp.ne.s32.totalorder %s28, %s29
      %p43 = scmp.eq.s32.totalorder %s21, 1
      %p44 = por %p42, %p43
      %p46 = scmp.ne.s32.totalorder %s29, %s45
      %p47 = scmp.eq.s32.totalorder %s21, 0
      %p48 = por %p46, %p47
      %s50 = sadd.s32 %s49, 1
      %p53 = scmp.eq.s32.totalorder %s15, 1
      %p54 = scmp.ne.s32.totalorder %s49, %s51
      %p55 = scmp.eq.s32.totalorder %s15, 0
      %p56 = por %p54, %p55
      %p57 = scmp.ne.s32.totalorder %s49, %s51
      %p58 = scmp.eq.s32.totalorder %s20, 1
      %p59 = por %p57, %p58
      %p60 = scmp.ne.s32.totalorder %s51, %s52
      %p61 = scmp.eq.s32.totalorder %s20, 0
      %p62 = por %p60, %p61
      %p63 = scmp.ne.s32.totalorder %s51, %s52
      %p64 = scmp.eq.s32.totalorder %s21, 1
      %p65 = por %p63, %p64
      %p67 = scmp.ne.s32.totalorder %s52, %s66
      %p68 = scmp.eq.s32.totalorder %s21, 0
      %p69 = por %p67, %p68
      %s71 = sadd.s32 %s70, 1
      %p74 = scmp.eq.s32.totalorder %s15, 1
      %p75 = scmp.ne.s32.totalorder %s70, %s72
      %p76 = scmp.eq.s32.totalorder %s15, 0
      %p77 = por %p75, %p76
      %p78 = scmp.ne.s32.totalorder %s70, %s72
      %p79 = scmp.eq.s32.totalorder %s20, 1
      %p80 = por %p78, %p79
      %p81 = scmp.ne.s32.totalorder %s72, %s73
      %p82 = scmp.eq.s32.totalorder %s20, 0
      %p83 = por %p81, %p82
      %p84 = scmp.ne.s32.totalorder %s72, %s73
      %p85 = scmp.eq.s32.totalorder %s21, 1
      %p86 = por %p84, %p85
      %p88 = scmp.ne.s32.totalorder %s73, %s87
      %p89 = scmp.eq.s32.totalorder %s21, 0
      %p90 = por %p88, %p89
      %s92 = sadd.s32 %s91, 1
      %p95 = scmp.eq.s32.totalorder %s15, 1
      %p96 = scmp.ne.s32.totalorder %s91, %s93
      %p97 = scmp.eq.s32.totalorder %s15, 0
      %p98 = por %p96, %p97
      %p99 = scmp.ne.s32.totalorder %s91, %s93
      %p100 = scmp.eq.s32.totalorder %s20, 1
      %p101 = por %p99, %p100
      %p102 = scmp.ne.s32.totalorder %s93, %s94
      %p103 = scmp.eq.s32.totalorder %s20, 0
      %p104 = por %p102, %p103
      %p105 = scmp.ne.s32.totalorder %s93, %s94
      %p106 = scmp.eq.s32.totalorder %s21, 1
      %p107 = por %p105, %p106
      %p109 = scmp.ne.s32.totalorder %s94, %s108
      %p110 = scmp.eq.s32.totalorder %s21, 0
      %p111 = por %p109, %p110
      %s113 = sadd.s32 %s112, 1
      %p116 = scmp.eq.s32.totalorder %s15, 1
      %p117 = scmp.ne.s32.totalorder %s112, %s114
      %p118 = scmp.eq.s32.totalorder %s15, 0
      %p119 = por %p117, %p118
      %p120 = scmp.ne.s32.totalorder %s112, %s114
      %p121 = scmp.eq.s32.totalorder %s20, 1
      %p122 = por %p120, %p121
      %p123 = scmp.ne.s32.totalorder %s114, %s115
      %p124 = scmp.eq.s32.totalorder %s20, 0
      %p125 = por %p123, %p124
      %p126 = scmp.ne.s32.totalorder %s114, %s115
      %p127 = scmp.eq.s32.totalorder %s21, 1
      %p128 = por %p126, %p127
      %p130 = scmp.ne.s32.totalorder %s115, %s129
      %p131 = scmp.eq.s32.totalorder %s21, 0
      %p132 = por %p130, %p131
      %s134 = sadd.s32 %s133, 1
      %p137 = scmp.eq.s32.totalorder %s15, 1
      %p138 = scmp.ne.s32.totalorder %s133, %s135
      %p139 = scmp.eq.s32.totalorder %s15, 0
      %p140 = por %p138, %p139
      %p141 = scmp.ne.s32.totalorder %s133, %s135
      %p142 = scmp.eq.s32.totalorder %s20, 1
      %p143 = por %p141, %p142
      %p144 = scmp.ne.s32.totalorder %s135, %s136
      %p145 = scmp.eq.s32.totalorder %s20, 0
      %p146 = por %p144, %p145
      %p147 = scmp.ne.s32.totalorder %s135, %s136
      %p148 = scmp.eq.s32.totalorder %s21, 1
      %p149 = por %p147, %p148
      %p151 = scmp.ne.s32.totalorder %s136, %s150
      %p152 = scmp.eq.s32.totalorder %s21, 0
      %p153 = por %p151, %p152
      %s154 = ssub.s32 %s15, %s22
      %p155 = scmp.eq.s32.totalorder %s154, 0
      %s157 = sadd.s32 %s156, 1
      %s158 = scalar_select %p155, %s156, %s157
      %p161 = pneg %p155
      %p162 = scmp.eq.s32.totalorder %s15, 1
      %p163 = por %p161, %p162
      %p164 = scmp.ne.s32.totalorder %s156, %s159
      %p165 = scmp.eq.s32.totalorder %s15, 0
      %p166 = por %p164, %p165
      %p167 = scmp.ne.s32.totalorder %s156, %s159
      %p168 = scmp.eq.s32.totalorder %s20, 1
      %p169 = por %p167, %p168
      %p170 = scmp.ne.s32.totalorder %s159, %s160
      %p171 = scmp.eq.s32.totalorder %s20, 0
      %p172 = por %p170, %p171
      %p173 = scmp.ne.s32.totalorder %s159, %s160
      %p174 = scmp.eq.s32.totalorder %s21, 1
      %p175 = por %p173, %p174
      %p177 = scmp.ne.s32.totalorder %s160, %s176
      %p178 = scmp.eq.s32.totalorder %s21, 0
      %p179 = por %p177, %p178
      %p180 = scmp.le.s32.totalorder 1, %s15
      %p181 = scmp.lt.s32.totalorder %s15, 3
      %p182 = pnand %p180, %p181
      %p183 = pneg %p182
      // Predicated region
      $region9: #{tpu_custom_call.1} parent=5 // pred_check
        _
      $region10: #{tpu_custom_call.1} parent=5 // pred_check_branch
        %185 = sbr.rel (%p182) target = $region12
      $region11: #{tpu_custom_call.1} parent=5 // pred_region
        %s186 = ssub.s32 %s15, 1
        // Predicated region
        $region13: #{tpu_custom_call.1} parent=11 // pred_check
          %p187 = pneg %p62
        $region14: #{tpu_custom_call.1} parent=11 // pred_check_branch
          %189 = sbr.rel (%p187) target = $region16
        $region15: #{tpu_custom_call.1} parent=11 // pred_region
          _
        $region16: #{tpu_custom_call.1} parent=11 // pred_fallthru
          _
        // Predicated region
        $region17: #{tpu_custom_call.1} parent=11 // pred_check
          %p190 = pneg %p83
        $region18: #{tpu_custom_call.1} parent=11 // pred_check_branch
          %192 = sbr.rel (%p190) target = $region20
        $region19: #{tpu_custom_call.1} parent=11 // pred_region
          _
        $region20: #{tpu_custom_call.1} parent=11 // pred_fallthru
          _
        // Predicated region
        $region21: #{tpu_custom_call.1} parent=11 // pred_check
          %p193 = pneg %p104
        $region22: #{tpu_custom_call.1} parent=11 // pred_check_branch
          %195 = sbr.rel (%p193) target = $region24
        $region23: #{tpu_custom_call.1} parent=11 // pred_region
          _
        $region24: #{tpu_custom_call.1} parent=11 // pred_fallthru
          _
        // Predicated region
        $region25: #{tpu_custom_call.1} parent=11 // pred_check
          %p196 = pneg %p125
        $region26: #{tpu_custom_call.1} parent=11 // pred_check_branch
          %198 = sbr.rel (%p196) target = $region28
        $region27: #{tpu_custom_call.1} parent=11 // pred_region
          _
        $region28: #{tpu_custom_call.1} parent=11 // pred_fallthru
          _
        // Predicated region
        $region29: #{tpu_custom_call.1} parent=11 // pred_check
          %p199 = pneg %p146
        $region30: #{tpu_custom_call.1} parent=11 // pred_check_branch
          %201 = sbr.rel (%p199) target = $region32
        $region31: #{tpu_custom_call.1} parent=11 // pred_region
          _
        $region32: #{tpu_custom_call.1} parent=11 // pred_fallthru
          _
      $region12: #{tpu_custom_call.1} parent=5 // pred_fallthru
        _
      %p202 = scmp.lt.s32.totalorder %s15, 2
      // Predicated region
      $region33: #{tpu_custom_call.1} parent=5 // pred_check
        %p203 = pneg %p202
      $region34: #{tpu_custom_call.1} parent=5 // pred_check_branch
        %205 = sbr.rel (%p203) target = $region36
      $region35: #{tpu_custom_call.1} parent=5 // pred_region
        // Predicated region
        $region37: #{tpu_custom_call.1} parent=35 // pred_check
          %p206 = pneg %p35
        $region38: #{tpu_custom_call.1} parent=35 // pred_check_branch
          %208 = sbr.rel (%p206) target = $region40
        $region39: #{tpu_custom_call.1} parent=35 // pred_region
          %p209 = scmp.lt.s32.totalorder %s15, 1
          %s210 = scalar_select %p209, %s15, 1
          %s211 = smul.addr %s210, 2
          %s212 = smul.addr %s211, 4
          %s213 = scalar_lea.vmem %s0, %s212
        $region40: #{tpu_custom_call.1} parent=35 // pred_fallthru
          _
      $region36: #{tpu_custom_call.1} parent=5 // pred_fallthru
        _
      %p214 = scmp.le.s32.totalorder 1, %s15
      %p215 = scmp.lt.s32.totalorder %s15, 3
      %p216 = pnand %p214, %p215
      %p217 = pneg %p216
      // Predicated region
      $region41: #{tpu_custom_call.1} parent=5 // pred_check
        _
      $region42: #{tpu_custom_call.1} parent=5 // pred_check_branch
        %219 = sbr.rel (%p216) target = $region44
      $region43: #{tpu_custom_call.1} parent=5 // pred_region
        %s220 = ssub.s32 %s15, 1
        %p221 = scmp.lt.s32.totalorder %s20, 1
        %s222 = scalar_select %p221, %s20, 1
        %s223 = smul.addr %s222, 2
        %s224 = smul.addr %s223, 4
        %s225 = scalar_lea.vmem %s0, %s224
        %p226 = pneg %p41
        %p227 = pneg %p38
        %p228 = pneg %p62
        %p229 = pneg %p59
        %p230 = pneg %p83
        %p231 = pneg %p80
        %p232 = pneg %p104
        %p233 = pneg %p101
        %p234 = pneg %p125
        %p235 = pneg %p122
        %p236 = pneg %p146
        %p237 = pneg %p143
        %p238 = pneg %p172
        %p239 = pneg %p169
        %s240 = sand.u32 %s159, 1
        %s241 = scalar_lea.sflag [#allocation3], %s240
        %s242 = sand.u32 %s159, 1
        %s243 = smul.addr %s242, 8
        %s244 = scalar_lea.vmem [#allocation2], %s243
        %p245 = scmp.lt.s32.totalorder %s20, 1
        %s246 = scalar_select %p245, %s20, 1
        %s247 = smul.addr %s246, 2
        %s248 = smul.addr %s247, 4
        %s249 = scalar_lea.vmem %s0, %s248
        %v250 = vld [vmem:[%s249] sm:$0xff]
        %v252 = vcombine.high %v250, %v250
        %254 = vrot.lane.b32.xlu0 %v250, 17
        %v255 = vpop.permute.xlu0 %254
        %256 = vrot.lane.b32.xlu0 %v252, 17
        %v257 = vpop.permute.xlu0 %256
        %v258 = vlaneseq
        %v259 = vand.u32 %v258, 127
        %vm260 = vcmp.lt.s32.totalorder %v259, 17
        %v261 = vsel %vm260, %v255, %v257
        %v262 = vsel %vm260, %v257, %v255
        %v263 = vld [vmem:[%s5] sm:$0x3]
        %v265 = vlaneseq
        %v266 = vshrl.u32 %v265, 7
        %v267 = vsub.s32 0, %v266
        %v268 = vrot.slane %v263, %v267
        %v269 = vlaneseq
        %v270 = vshrl.u32 %v269, 7
        %v271 = vsub.s32 1, %v270
        %v272 = vrot.slane %v263, %v271
        %v275 = vmul.f32 %v262, %v268
        %v276 = vmul.f32 %v261, %v272
        %v277 = vld [vmem:[%s1] sm:$0xff]
        %278 = vrot.lane.b32.xlu0 %v250, 16
        %v279 = vpop.permute.xlu0 %278
        %280 = vrot.lane.b32.xlu0 %v252, 16
        %v281 = vpop.permute.xlu0 %280
        %vm282 = vcmp.lt.s32.totalorder %v259, 16
        %v283 = vsel %vm282, %v279, %v281
        %v284 = vsel %vm282, %v281, %v279
        %s285 = scalar_lea.vmem %s5, 2
        %v286 = vld [vmem:[%s285] sm:$0x3]
        %v288 = vlaneseq
        %v289 = vshrl.u32 %v288, 7
        %v290 = vsub.s32 0, %v289
        %v291 = vrot.slane %v286, %v290
        %v292 = vlaneseq
        %v293 = vshrl.u32 %v292, 7
        %v294 = vsub.s32 1, %v293
        %v295 = vrot.slane %v286, %v294
        %v298 = vmul.f32 %v284, %v291
        %v299 = vmul.f32 %v283, %v295
        %s300 = scalar_lea.vmem %s1, 8
        %v301 = vld [vmem:[%s300] sm:$0xff]
        %vm302 = vcmask 31744
        %v304 = vsel %vm302, %v301, 0
        %vm306 = vcmask 1043456
        %v308 = vsel %vm306, %v298, 0
        %v311 = vsel %vm306, %v299, 0
        %313 = vmatprep.subr.mxu0 %v311
        %314 = vmatpush1.msra.mxu0 %v308
        %315 = vmatprep.subr.mxu0 0.0
        %316 = vmatpush1.msra.mxu0 0.0
        %317 = vmatprep.subr.mxu0 0.0
        %318 = vmatpush1.msra.mxu0 0.0
        %319 = vmatprep.subr.mxu0 0.0
        %320 = vmatpush1.msra.mxu0 0.0
        %321 = vmatprep.subr.mxu0 0.0
        %322 = vmatpush1.msra.mxu0 0.0
        %323 = vmatprep.subr.mxu0 0.0
        %324 = vmatpush1.msra.mxu0 0.0
        %325 = vmatprep.subr.mxu0 0.0
        %326 = vmatpush1.msra.mxu0 0.0
        %327 = vmatprep.subr.mxu0 0.0
        %328 = vmatpush1.msra.mxu0 0.0
        %329 = vmatprep.subr.mxu0 0.0
        %330 = vmatpush1.msra.mxu0 0.0
        %331 = vmatprep.subr.mxu0 0.0
        %332 = vmatpush1.msra.mxu0 0.0
        %333 = vmatprep.subr.mxu0 0.0
        %334 = vmatpush1.msra.mxu0 0.0
        %335 = vmatprep.subr.mxu0 0.0
        %336 = vmatpush1.msra.mxu0 0.0
        %337 = vmatprep.subr.mxu0 0.0
        %338 = vmatpush1.msra.mxu0 0.0
        %339 = vmatprep.subr.mxu0 0.0
        %340 = vmatpush1.msra.mxu0 0.0
        %341 = vmatprep.subr.mxu0 0.0
        %342 = vmatpush1.msra.mxu0 0.0
        %343 = vmatprep.subr.mxu0 0.0
        %344 = vmatpush1.msra.mxu0 0.0
        %345 = vmatprep.subr.mxu0 0.0
        %346 = vmatpush1.msra.mxu0 0.0
        %347 = vmatprep.subr.mxu0 0.0
        %348 = vmatpush1.msra.mxu0 0.0
        %349 = vmatprep.subr.mxu0 0.0
        %350 = vmatpush1.msra.mxu0 0.0
        %351 = vmatprep.subr.mxu0 0.0
        %352 = vmatpush1.msra.mxu0 0.0
        %353 = vmatprep.subr.mxu0 0.0
        %354 = vmatpush1.msra.mxu0 0.0
        %355 = vmatprep.subr.mxu0 0.0
        %356 = vmatpush1.msra.mxu0 0.0
        %357 = vmatprep.subr.mxu0 0.0
        %358 = vmatpush1.msra.mxu0 0.0
        %359 = vmatprep.subr.mxu0 0.0
        %360 = vmatpush1.msra.mxu0 0.0
        %361 = vmatprep.subr.mxu0 0.0
        %362 = vmatpush1.msra.mxu0 0.0
        %363 = vmatprep.subr.mxu0 0.0
        %364 = vmatpush1.msra.mxu0 0.0
        %365 = vmatprep.subr.mxu0 0.0
        %366 = vmatpush1.msra.mxu0 0.0
        %367 = vmatprep.subr.mxu0 0.0
        %368 = vmatpush1.msra.mxu0 0.0
        %369 = vmatprep.subr.mxu0 0.0
        %370 = vmatpush1.msra.mxu0 0.0
        %371 = vmatprep.subr.mxu0 0.0
        %372 = vmatpush1.msra.mxu0 0.0
        %373 = vmatprep.subr.mxu0 0.0
        %374 = vmatpush1.msra.mxu0 0.0
        %375 = vmatprep.subr.mxu0 0.0
        %376 = vmatpush1.msra.mxu0 0.0
        %377 = vmatprep.mubr.f32.mxu0 0.0
        %378 = vmatmul.mubr.f32.gmra.mrb[0].mxu0 %v304
        %v379 = vpop.f32.mrb[0].mxu0
        %v380 = vadd.f32 0.0, %v379
        %v381 = vpop.f32.mrb[0].mxu0
        %v382 = vadd.f32 0.0, %v381
        %383 = vdwg.mxu0
        %v385 = vsel %vm302, %v277, 0
        %v388 = vsel %vm306, %v275, 0
        %v391 = vsel %vm306, %v276, 0
        %393 = vmatprep.subr.mxu0 %v391
        %394 = vmatpush1.msra.mxu0 %v388
        %395 = vmatprep.subr.mxu0 0.0
        %396 = vmatpush1.msra.mxu0 0.0
        %397 = vmatprep.subr.mxu0 0.0
        %398 = vmatpush1.msra.mxu0 0.0
        %399 = vmatprep.subr.mxu0 0.0
        %400 = vmatpush1.msra.mxu0 0.0
        %401 = vmatprep.subr.mxu0 0.0
        %402 = vmatpush1.msra.mxu0 0.0
        %403 = vmatprep.subr.mxu0 0.0
        %404 = vmatpush1.msra.mxu0 0.0
        %405 = vmatprep.subr.mxu0 0.0
        %406 = vmatpush1.msra.mxu0 0.0
        %407 = vmatprep.subr.mxu0 0.0
        %408 = vmatpush1.msra.mxu0 0.0
        %409 = vmatprep.subr.mxu0 0.0
        %410 = vmatpush1.msra.mxu0 0.0
        %411 = vmatprep.subr.mxu0 0.0
        %412 = vmatpush1.msra.mxu0 0.0
        %413 = vmatprep.subr.mxu0 0.0
        %414 = vmatpush1.msra.mxu0 0.0
        %415 = vmatprep.subr.mxu0 0.0
        %416 = vmatpush1.msra.mxu0 0.0
        %417 = vmatprep.subr.mxu0 0.0
        %418 = vmatpush1.msra.mxu0 0.0
        %419 = vmatprep.subr.mxu0 0.0
        %420 = vmatpush1.msra.mxu0 0.0
        %421 = vmatprep.subr.mxu0 0.0
        %422 = vmatpush1.msra.mxu0 0.0
        %423 = vmatprep.subr.mxu0 0.0
        %424 = vmatpush1.msra.mxu0 0.0
        %425 = vmatprep.subr.mxu0 0.0
        %426 = vmatpush1.msra.mxu0 0.0
        %427 = vmatprep.subr.mxu0 0.0
        %428 = vmatpush1.msra.mxu0 0.0
        %429 = vmatprep.subr.mxu0 0.0
        %430 = vmatpush1.msra.mxu0 0.0
        %431 = vmatprep.subr.mxu0 0.0
        %432 = vmatpush1.msra.mxu0 0.0
        %433 = vmatprep.subr.mxu0 0.0
        %434 = vmatpush1.msra.mxu0 0.0
        %435 = vmatprep.subr.mxu0 0.0
        %436 = vmatpush1.msra.mxu0 0.0
        %437 = vmatprep.subr.mxu0 0.0
        %438 = vmatpush1.msra.mxu0 0.0
        %439 = vmatprep.subr.mxu0 0.0
        %440 = vmatpush1.msra.mxu0 0.0
        %441 = vmatprep.subr.mxu0 0.0
        %442 = vmatpush1.msra.mxu0 0.0
        %443 = vmatprep.subr.mxu0 0.0
        %444 = vmatpush1.msra.mxu0 0.0
        %445 = vmatprep.subr.mxu0 0.0
        %446 = vmatpush1.msra.mxu0 0.0
        %447 = vmatprep.subr.mxu0 0.0
        %448 = vmatpush1.msra.mxu0 0.0
        %449 = vmatprep.subr.mxu0 0.0
        %450 = vmatpush1.msra.mxu0 0.0
        %451 = vmatprep.subr.mxu0 0.0
        %452 = vmatpush1.msra.mxu0 0.0
        %453 = vmatprep.subr.mxu0 0.0
        %454 = vmatpush1.msra.mxu0 0.0
        %455 = vmatprep.subr.mxu0 0.0
        %456 = vmatpush1.msra.mxu0 0.0
        %457 = vmatprep.mubr.f32.mxu0 0.0
        %458 = vmatmul.mubr.f32.gmra.mrb[0].mxu0 %v385
        %v459 = vpop.f32.mrb[0].mxu0
        %v460 = vadd.f32 %v380, %v459
        %v461 = vpop.f32.mrb[0].mxu0
        %v462 = vadd.f32 %v382, %v461
        %463 = vdwg.mxu0
        %464 = vrot.lane.b32.xlu0 %v250, 15
        %v465 = vpop.permute.xlu0 %464
        %466 = vrot.lane.b32.xlu0 %v252, 15
        %v467 = vpop.permute.xlu0 %466
        %vm468 = vcmp.lt.s32.totalorder %v259, 15
        %v469 = vsel %vm468, %v465, %v467
        %v470 = vsel %vm468, %v467, %v465
        %s471 = scalar_lea.vmem %s5, 4
        %v472 = vld [vmem:[%s471] sm:$0x3]
        %v474 = vlaneseq
        %v475 = vshrl.u32 %v474, 7
        %v476 = vsub.s32 0, %v475
        %v477 = vrot.slane %v472, %v476
        %v478 = vlaneseq
        %v479 = vshrl.u32 %v478, 7
        %v480 = vsub.s32 1, %v479
        %v481 = vrot.slane %v472, %v480
        %v484 = vmul.f32 %v470, %v477
        %v485 = vmul.f32 %v469, %v481
        %s486 = scalar_lea.vmem %s1, 16
        %v487 = vld [vmem:[%s486] sm:$0xff]
        %v489 = vsel %vm302, %v487, 0
        %v492 = vsel %vm306, %v484, 0
        %v495 = vsel %vm306, %v485, 0
        %497 = vmatprep.subr.mxu0 %v495
        %498 = vmatpush1.msra.mxu0 %v492
        %499 = vmatprep.subr.mxu0 0.0
        %500 = vmatpush1.msra.mxu0 0.0
        %501 = vmatprep.subr.mxu0 0.0
        %502 = vmatpush1.msra.mxu0 0.0
        %503 = vmatprep.subr.mxu0 0.0
        %504 = vmatpush1.msra.mxu0 0.0
        %505 = vmatprep.subr.mxu0 0.0
        %506 = vmatpush1.msra.mxu0 0.0
        %507 = vmatprep.subr.mxu0 0.0
        %508 = vmatpush1.msra.mxu0 0.0
        %509 = vmatprep.subr.mxu0 0.0
        %510 = vmatpush1.msra.mxu0 0.0
        %511 = vmatprep.subr.mxu0 0.0
        %512 = vmatpush1.msra.mxu0 0.0
        %513 = vmatprep.subr.mxu0 0.0
        %514 = vmatpush1.msra.mxu0 0.0
        %515 = vmatprep.subr.mxu0 0.0
        %516 = vmatpush1.msra.mxu0 0.0
        %517 = vmatprep.subr.mxu0 0.0
        %518 = vmatpush1.msra.mxu0 0.0
        %519 = vmatprep.subr.mxu0 0.0
        %520 = vmatpush1.msra.mxu0 0.0
        %521 = vmatprep.subr.mxu0 0.0
        %522 = vmatpush1.msra.mxu0 0.0
        %523 = vmatprep.subr.mxu0 0.0
        %524 = vmatpush1.msra.mxu0 0.0
        %525 = vmatprep.subr.mxu0 0.0
        %526 = vmatpush1.msra.mxu0 0.0
        %527 = vmatprep.subr.mxu0 0.0
        %528 = vmatpush1.msra.mxu0 0.0
        %529 = vmatprep.subr.mxu0 0.0
        %530 = vmatpush1.msra.mxu0 0.0
        %531 = vmatprep.subr.mxu0 0.0
        %532 = vmatpush1.msra.mxu0 0.0
        %533 = vmatprep.subr.mxu0 0.0
        %534 = vmatpush1.msra.mxu0 0.0
        %535 = vmatprep.subr.mxu0 0.0
        %536 = vmatpush1.msra.mxu0 0.0
        %537 = vmatprep.subr.mxu0 0.0
        %538 = vmatpush1.msra.mxu0 0.0
        %539 = vmatprep.subr.mxu0 0.0
        %540 = vmatpush1.msra.mxu0 0.0
        %541 = vmatprep.subr.mxu0 0.0
        %542 = vmatpush1.msra.mxu0 0.0
        %543 = vmatprep.subr.mxu0 0.0
        %544 = vmatpush1.msra.mxu0 0.0
        %545 = vmatprep.subr.mxu0 0.0
        %546 = vmatpush1.msra.mxu0 0.0
        %547 = vmatprep.subr.mxu0 0.0
        %548 = vmatpush1.msra.mxu0 0.0
        %549 = vmatprep.subr.mxu0 0.0
        %550 = vmatpush1.msra.mxu0 0.0
        %551 = vmatprep.subr.mxu0 0.0
        %552 = vmatpush1.msra.mxu0 0.0
        %553 = vmatprep.subr.mxu0 0.0
        %554 = vmatpush1.msra.mxu0 0.0
        %555 = vmatprep.subr.mxu0 0.0
        %556 = vmatpush1.msra.mxu0 0.0
        %557 = vmatprep.subr.mxu0 0.0
        %558 = vmatpush1.msra.mxu0 0.0
        %559 = vmatprep.subr.mxu0 0.0
        %560 = vmatpush1.msra.mxu0 0.0
        %561 = vmatprep.mubr.f32.mxu0 0.0
        %562 = vmatmul.mubr.f32.gmra.mrb[0].mxu0 %v489
        %v563 = vpop.f32.mrb[0].mxu0
        %v564 = vadd.f32 0.0, %v563
        %v565 = vpop.f32.mrb[0].mxu0
        %v566 = vadd.f32 0.0, %v565
        %567 = vdwg.mxu0
        %v568 = vadd.f32 %v460, %v564
        %v569 = vadd.f32 %v462, %v566
        %570 = vrot.lane.b32.xlu0 %v250, 1
        %v571 = vpop.permute.xlu0 %570
        %572 = vrot.lane.b32.xlu0 %v252, 1
        %v573 = vpop.permute.xlu0 %572
        %vm574 = vcmp.lt.s32.totalorder %v259, 1
        %v575 = vsel %vm574, %v571, %v573
        %v576 = vsel %vm574, %v573, %v571
        %s577 = scalar_lea.vmem %s5, 6
        %v578 = vld [vmem:[%s577] sm:$0x3]
        %v580 = vlaneseq
        %v581 = vshrl.u32 %v580, 7
        %v582 = vsub.s32 0, %v581
        %v583 = vrot.slane %v578, %v582
        %v584 = vlaneseq
        %v585 = vshrl.u32 %v584, 7
        %v586 = vsub.s32 1, %v585
        %v587 = vrot.slane %v578, %v586
        %v590 = vmul.f32 %v576, %v583
        %v591 = vmul.f32 %v575, %v587
        %s592 = scalar_lea.vmem %s1, 24
        %v593 = vld [vmem:[%s592] sm:$0xff]
        %v595 = vsel %vm302, %v593, 0
        %v598 = vsel %vm306, %v590, 0
        %v601 = vsel %vm306, %v591, 0
        %603 = vmatprep.subr.mxu0 %v601
        %604 = vmatpush1.msra.mxu0 %v598
        %605 = vmatprep.subr.mxu0 0.0
        %606 = vmatpush1.msra.mxu0 0.0
        %607 = vmatprep.subr.mxu0 0.0
        %608 = vmatpush1.msra.mxu0 0.0
        %609 = vmatprep.subr.mxu0 0.0
        %610 = vmatpush1.msra.mxu0 0.0
        %611 = vmatprep.subr.mxu0 0.0
        %612 = vmatpush1.msra.mxu0 0.0
        %613 = vmatprep.subr.mxu0 0.0
        %614 = vmatpush1.msra.mxu0 0.0
        %615 = vmatprep.subr.mxu0 0.0
        %616 = vmatpush1.msra.mxu0 0.0
        %617 = vmatprep.subr.mxu0 0.0
        %618 = vmatpush1.msra.mxu0 0.0
        %619 = vmatprep.subr.mxu0 0.0
        %620 = vmatpush1.msra.mxu0 0.0
        %621 = vmatprep.subr.mxu0 0.0
        %622 = vmatpush1.msra.mxu0 0.0
        %623 = vmatprep.subr.mxu0 0.0
        %624 = vmatpush1.msra.mxu0 0.0
        %625 = vmatprep.subr.mxu0 0.0
        %626 = vmatpush1.msra.mxu0 0.0
        %627 = vmatprep.subr.mxu0 0.0
        %628 = vmatpush1.msra.mxu0 0.0
        %629 = vmatprep.subr.mxu0 0.0
        %630 = vmatpush1.msra.mxu0 0.0
        %631 = vmatprep.subr.mxu0 0.0
        %632 = vmatpush1.msra.mxu0 0.0
        %633 = vmatprep.subr.mxu0 0.0
        %634 = vmatpush1.msra.mxu0 0.0
        %635 = vmatprep.subr.mxu0 0.0
        %636 = vmatpush1.msra.mxu0 0.0
        %637 = vmatprep.subr.mxu0 0.0
        %638 = vmatpush1.msra.mxu0 0.0
        %639 = vmatprep.subr.mxu0 0.0
        %640 = vmatpush1.msra.mxu0 0.0
        %641 = vmatprep.subr.mxu0 0.0
        %642 = vmatpush1.msra.mxu0 0.0
        %643 = vmatprep.subr.mxu0 0.0
        %644 = vmatpush1.msra.mxu0 0.0
        %645 = vmatprep.subr.mxu0 0.0
        %646 = vmatpush1.msra.mxu0 0.0
        %647 = vmatprep.subr.mxu0 0.0
        %648 = vmatpush1.msra.mxu0 0.0
        %649 = vmatprep.subr.mxu0 0.0
        %650 = vmatpush1.msra.mxu0 0.0
        %651 = vmatprep.subr.mxu0 0.0
        %652 = vmatpush1.msra.mxu0 0.0
        %653 = vmatprep.subr.mxu0 0.0
        %654 = vmatpush1.msra.mxu0 0.0
        %655 = vmatprep.subr.mxu0 0.0
        %656 = vmatpush1.msra.mxu0 0.0
        %657 = vmatprep.subr.mxu0 0.0
        %658 = vmatpush1.msra.mxu0 0.0
        %659 = vmatprep.subr.mxu0 0.0
        %660 = vmatpush1.msra.mxu0 0.0
        %661 = vmatprep.subr.mxu0 0.0
        %662 = vmatpush1.msra.mxu0 0.0
        %663 = vmatprep.subr.mxu0 0.0
        %664 = vmatpush1.msra.mxu0 0.0
        %665 = vmatprep.subr.mxu0 0.0
        %666 = vmatpush1.msra.mxu0 0.0
        %667 = vmatprep.mubr.f32.mxu0 0.0
        %668 = vmatmul.mubr.f32.gmra.mrb[0].mxu0 %v595
        %v669 = vpop.f32.mrb[0].mxu0
        %v670 = vadd.f32 0.0, %v669
        %v671 = vpop.f32.mrb[0].mxu0
        %v672 = vadd.f32 0.0, %v671
        %673 = vdwg.mxu0
        %v674 = vadd.f32 %v568, %v670
        %v675 = vadd.f32 %v569, %v672
        %s676 = scalar_lea.vmem %s1, 32
        %v677 = vld [vmem:[%s676] sm:$0xff]
        %v679 = vsel %vm302, %v677, 0
        %v681 = vsel %vm306, %v250, 0
        %v683 = vsel %vm306, %v252, 0
        %685 = vmatprep.subr.mxu0 %v683
        %686 = vmatpush1.msra.mxu0 %v681
        %687 = vmatprep.subr.mxu0 0.0
        %688 = vmatpush1.msra.mxu0 0.0
        %689 = vmatprep.subr.mxu0 0.0
        %690 = vmatpush1.msra.mxu0 0.0
        %691 = vmatprep.subr.mxu0 0.0
        %692 = vmatpush1.msra.mxu0 0.0
        %693 = vmatprep.subr.mxu0 0.0
        %694 = vmatpush1.msra.mxu0 0.0
        %695 = vmatprep.subr.mxu0 0.0
        %696 = vmatpush1.msra.mxu0 0.0
        %697 = vmatprep.subr.mxu0 0.0
        %698 = vmatpush1.msra.mxu0 0.0
        %699 = vmatprep.subr.mxu0 0.0
        %700 = vmatpush1.msra.mxu0 0.0
        %701 = vmatprep.subr.mxu0 0.0
        %702 = vmatpush1.msra.mxu0 0.0
        %703 = vmatprep.subr.mxu0 0.0
        %704 = vmatpush1.msra.mxu0 0.0
        %705 = vmatprep.subr.mxu0 0.0
        %706 = vmatpush1.msra.mxu0 0.0
        %707 = vmatprep.subr.mxu0 0.0
        %708 = vmatpush1.msra.mxu0 0.0
        %709 = vmatprep.subr.mxu0 0.0
        %710 = vmatpush1.msra.mxu0 0.0
        %711 = vmatprep.subr.mxu0 0.0
        %712 = vmatpush1.msra.mxu0 0.0
        %713 = vmatprep.subr.mxu0 0.0
        %714 = vmatpush1.msra.mxu0 0.0
        %715 = vmatprep.subr.mxu0 0.0
        %716 = vmatpush1.msra.mxu0 0.0
        %717 = vmatprep.subr.mxu0 0.0
        %718 = vmatpush1.msra.mxu0 0.0
        %719 = vmatprep.subr.mxu0 0.0
        %720 = vmatpush1.msra.mxu0 0.0
        %721 = vmatprep.subr.mxu0 0.0
        %722 = vmatpush1.msra.mxu0 0.0
        %723 = vmatprep.subr.mxu0 0.0
        %724 = vmatpush1.msra.mxu0 0.0
        %725 = vmatprep.subr.mxu0 0.0
        %726 = vmatpush1.msra.mxu0 0.0
        %727 = vmatprep.subr.mxu0 0.0
        %728 = vmatpush1.msra.mxu0 0.0
        %729 = vmatprep.subr.mxu0 0.0
        %730 = vmatpush1.msra.mxu0 0.0
        %731 = vmatprep.subr.mxu0 0.0
        %732 = vmatpush1.msra.mxu0 0.0
        %733 = vmatprep.subr.mxu0 0.0
        %734 = vmatpush1.msra.mxu0 0.0
        %735 = vmatprep.subr.mxu0 0.0
        %736 = vmatpush1.msra.mxu0 0.0
        %737 = vmatprep.subr.mxu0 0.0
        %738 = vmatpush1.msra.mxu0 0.0
        %739 = vmatprep.subr.mxu0 0.0
        %740 = vmatpush1.msra.mxu0 0.0
        %741 = vmatprep.subr.mxu0 0.0
        %742 = vmatpush1.msra.mxu0 0.0
        %743 = vmatprep.subr.mxu0 0.0
        %744 = vmatpush1.msra.mxu0 0.0
        %745 = vmatprep.subr.mxu0 0.0
        %746 = vmatpush1.msra.mxu0 0.0
        %747 = vmatprep.subr.mxu0 0.0
        %748 = vmatpush1.msra.mxu0 0.0
        %749 = vmatprep.mubr.f32.mxu0 0.0
        %750 = vmatmul.mubr.f32.gmra.mrb[0].mxu0 %v679
        %v751 = vpop.f32.mrb[0].mxu0
        %v752 = vadd.f32 0.0, %v751
        %v753 = vpop.f32.mrb[0].mxu0
        %v754 = vadd.f32 0.0, %v753
        %755 = vdwg.mxu0
        %v756 = vadd.f32 %v674, %v752
        %v757 = vadd.f32 %v675, %v754
        %758 = vrot.lane.b32.xlu0 %v250, 127
        %v759 = vpop.permute.xlu0 %758
        %760 = vrot.lane.b32.xlu0 %v252, 127
        %v761 = vpop.permute.xlu0 %760
        %vm762 = vcmp.lt.s32.totalorder %v259, 127
        %v763 = vsel %vm762, %v759, %v761
        %v764 = vsel %vm762, %v761, %v759
        %s765 = scalar_lea.vmem %s5, 10
        %v766 = vld [vmem:[%s765] sm:$0x3]
        %v768 = vlaneseq
        %v769 = vshrl.u32 %v768, 7
        %v770 = vsub.s32 0, %v769
        %v771 = vrot.slane %v766, %v770
        %v772 = vlaneseq
        %v773 = vshrl.u32 %v772, 7
        %v774 = vsub.s32 1, %v773
        %v775 = vrot.slane %v766, %v774
        %v778 = vmul.f32 %v763, %v771
        %v779 = vmul.f32 %v764, %v775
        %s780 = scalar_lea.vmem %s1, 40
        %v781 = vld [vmem:[%s780] sm:$0xff]
        %v783 = vsel %vm302, %v781, 0
        %v786 = vsel %vm306, %v778, 0
        %v789 = vsel %vm306, %v779, 0
        %791 = vmatprep.subr.mxu0 %v789
        %792 = vmatpush1.msra.mxu0 %v786
        %793 = vmatprep.subr.mxu0 0.0
        %794 = vmatpush1.msra.mxu0 0.0
        %795 = vmatprep.subr.mxu0 0.0
        %796 = vmatpush1.msra.mxu0 0.0
        %797 = vmatprep.subr.mxu0 0.0
        %798 = vmatpush1.msra.mxu0 0.0
        %799 = vmatprep.subr.mxu0 0.0
        %800 = vmatpush1.msra.mxu0 0.0
        %801 = vmatprep.subr.mxu0 0.0
        %802 = vmatpush1.msra.mxu0 0.0
        %803 = vmatprep.subr.mxu0 0.0
        %804 = vmatpush1.msra.mxu0 0.0
        %805 = vmatprep.subr.mxu0 0.0
        %806 = vmatpush1.msra.mxu0 0.0
        %807 = vmatprep.subr.mxu0 0.0
        %808 = vmatpush1.msra.mxu0 0.0
        %809 = vmatprep.subr.mxu0 0.0
        %810 = vmatpush1.msra.mxu0 0.0
        %811 = vmatprep.subr.mxu0 0.0
        %812 = vmatpush1.msra.mxu0 0.0
        %813 = vmatprep.subr.mxu0 0.0
        %814 = vmatpush1.msra.mxu0 0.0
        %815 = vmatprep.subr.mxu0 0.0
        %816 = vmatpush1.msra.mxu0 0.0
        %817 = vmatprep.subr.mxu0 0.0
        %818 = vmatpush1.msra.mxu0 0.0
        %819 = vmatprep.subr.mxu0 0.0
        %820 = vmatpush1.msra.mxu0 0.0
        %821 = vmatprep.subr.mxu0 0.0
        %822 = vmatpush1.msra.mxu0 0.0
        %823 = vmatprep.subr.mxu0 0.0
        %824 = vmatpush1.msra.mxu0 0.0
        %825 = vmatprep.subr.mxu0 0.0
        %826 = vmatpush1.msra.mxu0 0.0
        %827 = vmatprep.subr.mxu0 0.0
        %828 = vmatpush1.msra.mxu0 0.0
        %829 = vmatprep.subr.mxu0 0.0
        %830 = vmatpush1.msra.mxu0 0.0
        %831 = vmatprep.subr.mxu0 0.0
        %832 = vmatpush1.msra.mxu0 0.0
        %833 = vmatprep.subr.mxu0 0.0
        %834 = vmatpush1.msra.mxu0 0.0
        %835 = vmatprep.subr.mxu0 0.0
        %836 = vmatpush1.msra.mxu0 0.0
        %837 = vmatprep.subr.mxu0 0.0
        %838 = vmatpush1.msra.mxu0 0.0
        %839 = vmatprep.subr.mxu0 0.0
        %840 = vmatpush1.msra.mxu0 0.0
        %841 = vmatprep.subr.mxu0 0.0
        %842 = vmatpush1.msra.mxu0 0.0
        %843 = vmatprep.subr.mxu0 0.0
        %844 = vmatpush1.msra.mxu0 0.0
        %845 = vmatprep.subr.mxu0 0.0
        %846 = vmatpush1.msra.mxu0 0.0
        %847 = vmatprep.subr.mxu0 0.0
        %848 = vmatpush1.msra.mxu0 0.0
        %849 = vmatprep.subr.mxu0 0.0
        %850 = vmatpush1.msra.mxu0 0.0
        %851 = vmatprep.subr.mxu0 0.0
        %852 = vmatpush1.msra.mxu0 0.0
        %853 = vmatprep.subr.mxu0 0.0
        %854 = vmatpush1.msra.mxu0 0.0
        %855 = vmatprep.mubr.f32.mxu0 0.0
        %856 = vmatmul.mubr.f32.gmra.mrb[0].mxu0 %v783
        %v857 = vpop.f32.mrb[0].mxu0
        %v858 = vadd.f32 0.0, %v857
        %v859 = vpop.f32.mrb[0].mxu0
        %v860 = vadd.f32 0.0, %v859
        %861 = vdwg.mxu0
        %v862 = vadd.f32 %v756, %v858
        %v863 = vadd.f32 %v757, %v860
        %864 = vrot.lane.b32.xlu0 %v250, 113
        %v865 = vpop.permute.xlu0 %864
        %866 = vrot.lane.b32.xlu0 %v252, 113
        %v867 = vpop.permute.xlu0 %866
        %vm868 = vcmp.lt.s32.totalorder %v259, 113
        %v869 = vsel %vm868, %v865, %v867
        %v870 = vsel %vm868, %v867, %v865
        %s871 = scalar_lea.vmem %s5, 12
        %v872 = vld [vmem:[%s871] sm:$0x3]
        %v874 = vlaneseq
        %v875 = vshrl.u32 %v874, 7
        %v876 = vsub.s32 0, %v875
        %v877 = vrot.slane %v872, %v876
        %v878 = vlaneseq
        %v879 = vshrl.u32 %v878, 7
        %v880 = vsub.s32 1, %v879
        %v881 = vrot.slane %v872, %v880
        %v884 = vmul.f32 %v869, %v877
        %v885 = vmul.f32 %v870, %v881
        %s886 = scalar_lea.vmem %s1, 48
        %v887 = vld [vmem:[%s886] sm:$0xff]
        %v889 = vsel %vm302, %v887, 0
        %v892 = vsel %vm306, %v884, 0
        %v895 = vsel %vm306, %v885, 0
        %897 = vmatprep.subr.mxu0 %v895
        %898 = vmatpush1.msra.mxu0 %v892
        %899 = vmatprep.subr.mxu0 0.0
        %900 = vmatpush1.msra.mxu0 0.0
        %901 = vmatprep.subr.mxu0 0.0
        %902 = vmatpush1.msra.mxu0 0.0
        %903 = vmatprep.subr.mxu0 0.0
        %904 = vmatpush1.msra.mxu0 0.0
        %905 = vmatprep.subr.mxu0 0.0
        %906 = vmatpush1.msra.mxu0 0.0
        %907 = vmatprep.subr.mxu0 0.0
        %908 = vmatpush1.msra.mxu0 0.0
        %909 = vmatprep.subr.mxu0 0.0
        %910 = vmatpush1.msra.mxu0 0.0
        %911 = vmatprep.subr.mxu0 0.0
        %912 = vmatpush1.msra.mxu0 0.0
        %913 = vmatprep.subr.mxu0 0.0
        %914 = vmatpush1.msra.mxu0 0.0
        %915 = vmatprep.subr.mxu0 0.0
        %916 = vmatpush1.msra.mxu0 0.0
        %917 = vmatprep.subr.mxu0 0.0
        %918 = vmatpush1.msra.mxu0 0.0
        %919 = vmatprep.subr.mxu0 0.0
        %920 = vmatpush1.msra.mxu0 0.0
        %921 = vmatprep.subr.mxu0 0.0
        %922 = vmatpush1.msra.mxu0 0.0
        %923 = vmatprep.subr.mxu0 0.0
        %924 = vmatpush1.msra.mxu0 0.0
        %925 = vmatprep.subr.mxu0 0.0
        %926 = vmatpush1.msra.mxu0 0.0
        %927 = vmatprep.subr.mxu0 0.0
        %928 = vmatpush1.msra.mxu0 0.0
        %929 = vmatprep.subr.mxu0 0.0
        %930 = vmatpush1.msra.mxu0 0.0
        %931 = vmatprep.subr.mxu0 0.0
        %932 = vmatpush1.msra.mxu0 0.0
        %933 = vmatprep.subr.mxu0 0.0
        %934 = vmatpush1.msra.mxu0 0.0
        %935 = vmatprep.subr.mxu0 0.0
        %936 = vmatpush1.msra.mxu0 0.0
        %937 = vmatprep.subr.mxu0 0.0
        %938 = vmatpush1.msra.mxu0 0.0
        %939 = vmatprep.subr.mxu0 0.0
        %940 = vmatpush1.msra.mxu0 0.0
        %941 = vmatprep.subr.mxu0 0.0
        %942 = vmatpush1.msra.mxu0 0.0
        %943 = vmatprep.subr.mxu0 0.0
        %944 = vmatpush1.msra.mxu0 0.0
        %945 = vmatprep.subr.mxu0 0.0
        %946 = vmatpush1.msra.mxu0 0.0
        %947 = vmatprep.subr.mxu0 0.0
        %948 = vmatpush1.msra.mxu0 0.0
        %949 = vmatprep.subr.mxu0 0.0
        %950 = vmatpush1.msra.mxu0 0.0
        %951 = vmatprep.subr.mxu0 0.0
        %952 = vmatpush1.msra.mxu0 0.0
        %953 = vmatprep.subr.mxu0 0.0
        %954 = vmatpush1.msra.mxu0 0.0
        %955 = vmatprep.subr.mxu0 0.0
        %956 = vmatpush1.msra.mxu0 0.0
        %957 = vmatprep.subr.mxu0 0.0
        %958 = vmatpush1.msra.mxu0 0.0
        %959 = vmatprep.subr.mxu0 0.0
        %960 = vmatpush1.msra.mxu0 0.0
        %961 = vmatprep.mubr.f32.mxu0 0.0
        %962 = vmatmul.mubr.f32.gmra.mrb[0].mxu0 %v889
        %v963 = vpop.f32.mrb[0].mxu0
        %v964 = vadd.f32 0.0, %v963
        %v965 = vpop.f32.mrb[0].mxu0
        %v966 = vadd.f32 0.0, %v965
        %967 = vdwg.mxu0
        %v968 = vadd.f32 %v862, %v964
        %v969 = vadd.f32 %v863, %v966
        %970 = vrot.lane.b32.xlu0 %v250, 112
        %v971 = vpop.permute.xlu0 %970
        %972 = vrot.lane.b32.xlu0 %v252, 112
        %v973 = vpop.permute.xlu0 %972
        %vm974 = vcmp.lt.s32.totalorder %v259, 112
        %v975 = vsel %vm974, %v971, %v973
        %v976 = vsel %vm974, %v973, %v971
        %s977 = scalar_lea.vmem %s5, 14
        %v978 = vld [vmem:[%s977] sm:$0x3]
        %v980 = vlaneseq
        %v981 = vshrl.u32 %v980, 7
        %v982 = vsub.s32 0, %v981
        %v983 = vrot.slane %v978, %v982
        %v984 = vlaneseq
        %v985 = vshrl.u32 %v984, 7
        %v986 = vsub.s32 1, %v985
        %v987 = vrot.slane %v978, %v986
        %v990 = vmul.f32 %v975, %v983
        %v991 = vmul.f32 %v976, %v987
        %s992 = scalar_lea.vmem %s1, 56
        %v993 = vld [vmem:[%s992] sm:$0xff]
        %v995 = vsel %vm302, %v993, 0
        %v998 = vsel %vm306, %v990, 0
        %v1001 = vsel %vm306, %v991, 0
        %1003 = vmatprep.subr.mxu0 %v1001
        %1004 = vmatpush1.msra.mxu0 %v998
        %1005 = vmatprep.subr.mxu0 0.0
        %1006 = vmatpush1.msra.mxu0 0.0
        %1007 = vmatprep.subr.mxu0 0.0
        %1008 = vmatpush1.msra.mxu0 0.0
        %1009 = vmatprep.subr.mxu0 0.0
        %1010 = vmatpush1.msra.mxu0 0.0
        %1011 = vmatprep.subr.mxu0 0.0
        %1012 = vmatpush1.msra.mxu0 0.0
        %1013 = vmatprep.subr.mxu0 0.0
        %1014 = vmatpush1.msra.mxu0 0.0
        %1015 = vmatprep.subr.mxu0 0.0
        %1016 = vmatpush1.msra.mxu0 0.0
        %1017 = vmatprep.subr.mxu0 0.0
        %1018 = vmatpush1.msra.mxu0 0.0
        %1019 = vmatprep.subr.mxu0 0.0
        %1020 = vmatpush1.msra.mxu0 0.0
        %1021 = vmatprep.subr.mxu0 0.0
        %1022 = vmatpush1.msra.mxu0 0.0
        %1023 = vmatprep.subr.mxu0 0.0
        %1024 = vmatpush1.msra.mxu0 0.0
        %1025 = vmatprep.subr.mxu0 0.0
        %1026 = vmatpush1.msra.mxu0 0.0
        %1027 = vmatprep.subr.mxu0 0.0
        %1028 = vmatpush1.msra.mxu0 0.0
        %1029 = vmatprep.subr.mxu0 0.0
        %1030 = vmatpush1.msra.mxu0 0.0
        %1031 = vmatprep.subr.mxu0 0.0
        %1032 = vmatpush1.msra.mxu0 0.0
        %1033 = vmatprep.subr.mxu0 0.0
        %1034 = vmatpush1.msra.mxu0 0.0
        %1035 = vmatprep.subr.mxu0 0.0
        %1036 = vmatpush1.msra.mxu0 0.0
        %1037 = vmatprep.subr.mxu0 0.0
        %1038 = vmatpush1.msra.mxu0 0.0
        %1039 = vmatprep.subr.mxu0 0.0
        %1040 = vmatpush1.msra.mxu0 0.0
        %1041 = vmatprep.subr.mxu0 0.0
        %1042 = vmatpush1.msra.mxu0 0.0
        %1043 = vmatprep.subr.mxu0 0.0
        %1044 = vmatpush1.msra.mxu0 0.0
        %1045 = vmatprep.subr.mxu0 0.0
        %1046 = vmatpush1.msra.mxu0 0.0
        %1047 = vmatprep.subr.mxu0 0.0
        %1048 = vmatpush1.msra.mxu0 0.0
        %1049 = vmatprep.subr.mxu0 0.0
        %1050 = vmatpush1.msra.mxu0 0.0
        %1051 = vmatprep.subr.mxu0 0.0
        %1052 = vmatpush1.msra.mxu0 0.0
        %1053 = vmatprep.subr.mxu0 0.0
        %1054 = vmatpush1.msra.mxu0 0.0
        %1055 = vmatprep.subr.mxu0 0.0
        %1056 = vmatpush1.msra.mxu0 0.0
        %1057 = vmatprep.subr.mxu0 0.0
        %1058 = vmatpush1.msra.mxu0 0.0
        %1059 = vmatprep.subr.mxu0 0.0
        %1060 = vmatpush1.msra.mxu0 0.0
        %1061 = vmatprep.subr.mxu0 0.0
        %1062 = vmatpush1.msra.mxu0 0.0
        %1063 = vmatprep.subr.mxu0 0.0
        %1064 = vmatpush1.msra.mxu0 0.0
        %1065 = vmatprep.subr.mxu0 0.0
        %1066 = vmatpush1.msra.mxu0 0.0
        %1067 = vmatprep.mubr.f32.mxu0 0.0
        %1068 = vmatmul.mubr.f32.gmra.mrb[0].mxu0 %v995
        %v1069 = vpop.f32.mrb[0].mxu0
        %v1070 = vadd.f32 0.0, %v1069
        %v1071 = vpop.f32.mrb[0].mxu0
        %v1072 = vadd.f32 0.0, %v1071
        %1073 = vdwg.mxu0
        %v1074 = vadd.f32 %v968, %v1070
        %v1075 = vadd.f32 %v969, %v1072
        %1076 = vrot.lane.b32.xlu0 %v250, 111
        %v1077 = vpop.permute.xlu0 %1076
        %1078 = vrot.lane.b32.xlu0 %v252, 111
        %v1079 = vpop.permute.xlu0 %1078
        %vm1080 = vcmp.lt.s32.totalorder %v259, 111
        %v1081 = vsel %vm1080, %v1077, %v1079
        %v1082 = vsel %vm1080, %v1079, %v1077
        %s1083 = scalar_lea.vmem %s5, 16
        %v1084 = vld [vmem:[%s1083] sm:$0x3]
        %v1086 = vlaneseq
        %v1087 = vshrl.u32 %v1086, 7
        %v1088 = vsub.s32 0, %v1087
        %v1089 = vrot.slane %v1084, %v1088
        %v1090 = vlaneseq
        %v1091 = vshrl.u32 %v1090, 7
        %v1092 = vsub.s32 1, %v1091
        %v1093 = vrot.slane %v1084, %v1092
        %v1096 = vmul.f32 %v1081, %v1089
        %v1097 = vmul.f32 %v1082, %v1093
        %s1098 = scalar_lea.vmem %s1, 64
        %v1099 = vld [vmem:[%s1098] sm:$0xff]
        %v1101 = vsel %vm302, %v1099, 0
        %v1104 = vsel %vm306, %v1096, 0
        %v1107 = vsel %vm306, %v1097, 0
        %1109 = vmatprep.subr.mxu0 %v1107
        %1110 = vmatpush1.msra.mxu0 %v1104
        %1111 = vmatprep.subr.mxu0 0.0
        %1112 = vmatpush1.msra.mxu0 0.0
        %1113 = vmatprep.subr.mxu0 0.0
        %1114 = vmatpush1.msra.mxu0 0.0
        %1115 = vmatprep.subr.mxu0 0.0
        %1116 = vmatpush1.msra.mxu0 0.0
        %1117 = vmatprep.subr.mxu0 0.0
        %1118 = vmatpush1.msra.mxu0 0.0
        %1119 = vmatprep.subr.mxu0 0.0
        %1120 = vmatpush1.msra.mxu0 0.0
        %1121 = vmatprep.subr.mxu0 0.0
        %1122 = vmatpush1.msra.mxu0 0.0
        %1123 = vmatprep.subr.mxu0 0.0
        %1124 = vmatpush1.msra.mxu0 0.0
        %1125 = vmatprep.subr.mxu0 0.0
        %1126 = vmatpush1.msra.mxu0 0.0
        %1127 = vmatprep.subr.mxu0 0.0
        %1128 = vmatpush1.msra.mxu0 0.0
        %1129 = vmatprep.subr.mxu0 0.0
        %1130 = vmatpush1.msra.mxu0 0.0
        %1131 = vmatprep.subr.mxu0 0.0
        %1132 = vmatpush1.msra.mxu0 0.0
        %1133 = vmatprep.subr.mxu0 0.0
        %1134 = vmatpush1.msra.mxu0 0.0
        %1135 = vmatprep.subr.mxu0 0.0
        %1136 = vmatpush1.msra.mxu0 0.0
        %1137 = vmatprep.subr.mxu0 0.0
        %1138 = vmatpush1.msra.mxu0 0.0
        %1139 = vmatprep.subr.mxu0 0.0
        %1140 = vmatpush1.msra.mxu0 0.0
        %1141 = vmatprep.subr.mxu0 0.0
        %1142 = vmatpush1.msra.mxu0 0.0
        %1143 = vmatprep.subr.mxu0 0.0
        %1144 = vmatpush1.msra.mxu0 0.0
        %1145 = vmatprep.subr.mxu0 0.0
        %1146 = vmatpush1.msra.mxu0 0.0
        %1147 = vmatprep.subr.mxu0 0.0
        %1148 = vmatpush1.msra.mxu0 0.0
        %1149 = vmatprep.subr.mxu0 0.0
        %1150 = vmatpush1.msra.mxu0 0.0
        %1151 = vmatprep.subr.mxu0 0.0
        %1152 = vmatpush1.msra.mxu0 0.0
        %1153 = vmatprep.subr.mxu0 0.0
        %1154 = vmatpush1.msra.mxu0 0.0
        %1155 = vmatprep.subr.mxu0 0.0
        %1156 = vmatpush1.msra.mxu0 0.0
        %1157 = vmatprep.subr.mxu0 0.0
        %1158 = vmatpush1.msra.mxu0 0.0
        %1159 = vmatprep.subr.mxu0 0.0
        %1160 = vmatpush1.msra.mxu0 0.0
        %1161 = vmatprep.subr.mxu0 0.0
        %1162 = vmatpush1.msra.mxu0 0.0
        %1163 = vmatprep.subr.mxu0 0.0
        %1164 = vmatpush1.msra.mxu0 0.0
        %1165 = vmatprep.subr.mxu0 0.0
        %1166 = vmatpush1.msra.mxu0 0.0
        %1167 = vmatprep.subr.mxu0 0.0
        %1168 = vmatpush1.msra.mxu0 0.0
        %1169 = vmatprep.subr.mxu0 0.0
        %1170 = vmatpush1.msra.mxu0 0.0
        %1171 = vmatprep.subr.mxu0 0.0
        %1172 = vmatpush1.msra.mxu0 0.0
        %1173 = vmatprep.mubr.f32.mxu0 0.0
        %1174 = vmatmul.mubr.f32.gmra.mrb[0].mxu0 %v1101
        %v1175 = vpop.f32.mrb[0].mxu0
        %v1176 = vadd.f32 0.0, %v1175
        %v1177 = vpop.f32.mrb[0].mxu0
        %v1178 = vadd.f32 0.0, %v1177
        %1179 = vdwg.mxu0
        %v1180 = vadd.f32 %v1074, %v1176
        %v1181 = vadd.f32 %v1075, %v1178
        %v1182 = vld [vmem:[%s2] sm:$0xff]
        %1184 = vset.pattern.permute.xlu0 0
        %1185 = vperm.xlu0 %1184, %v1182
        %v1186 = vpop.permute.xlu0 %1185
        %v1188 = vadd.f32 %v1180, %v1186
        %v1189 = vadd.f32 %v1181, %v1186
        %v1190 = vmax.f32 %v1188, 0.0
        %v1191 = vmax.f32 %v1189, 0.0
        %1192 = vrot.lane.b32.xlu0 %v1190, 17
        %v1193 = vpop.permute.xlu0 %1192
        %1194 = vrot.lane.b32.xlu0 %v1191, 17
        %v1195 = vpop.permute.xlu0 %1194
        %v1196 = vsel %vm260, %v1193, %v1195
        %v1197 = vsel %vm260, %v1195, %v1193
        %v1198 = vmul.f32 %v1197, %v268
        %v1199 = vmul.f32 %v1196, %v272
        %v1200 = vld [vmem:[%s3] sm:$0xf]
        %1201 = vrot.lane.b32.xlu0 %v1190, 16
        %v1202 = vpop.permute.xlu0 %1201
        %1203 = vrot.lane.b32.xlu0 %v1191, 16
        %v1204 = vpop.permute.xlu0 %1203
        %v1205 = vsel %vm282, %v1202, %v1204
        %v1206 = vsel %vm282, %v1204, %v1202
        %v1207 = vmul.f32 %v1206, %v291
        %v1208 = vmul.f32 %v1205, %v295
        %s1209 = scalar_lea.vmem %s3, 4
        %v1210 = vld [vmem:[%s1209] sm:$0xf]
        %vm1211 = vcmask 64512
        %v1213 = vsel %vm1211, %v1210, 0
        %1215 = vmatprep.subr.mxu0 %v1208
        %1216 = vmatpush1.msra.mxu0 %v1207
        %1217 = vmatprep.subr.mxu0 0.0
        %1218 = vmatpush1.msra.mxu0 0.0
        %1219 = vmatprep.subr.mxu0 0.0
        %1220 = vmatpush1.msra.mxu0 0.0
        %1221 = vmatprep.subr.mxu0 0.0
        %1222 = vmatpush1.msra.mxu0 0.0
        %1223 = vmatprep.subr.mxu0 0.0
        %1224 = vmatpush1.msra.mxu0 0.0
        %1225 = vmatprep.subr.mxu0 0.0
        %1226 = vmatpush1.msra.mxu0 0.0
        %1227 = vmatprep.subr.mxu0 0.0
        %1228 = vmatpush1.msra.mxu0 0.0
        %1229 = vmatprep.subr.mxu0 0.0
        %1230 = vmatpush1.msra.mxu0 0.0
        %1231 = vmatprep.subr.mxu0 0.0
        %1232 = vmatpush1.msra.mxu0 0.0
        %1233 = vmatprep.subr.mxu0 0.0
        %1234 = vmatpush1.msra.mxu0 0.0
        %1235 = vmatprep.subr.mxu0 0.0
        %1236 = vmatpush1.msra.mxu0 0.0
        %1237 = vmatprep.subr.mxu0 0.0
        %1238 = vmatpush1.msra.mxu0 0.0
        %1239 = vmatprep.subr.mxu0 0.0
        %1240 = vmatpush1.msra.mxu0 0.0
        %1241 = vmatprep.subr.mxu0 0.0
        %1242 = vmatpush1.msra.mxu0 0.0
        %1243 = vmatprep.subr.mxu0 0.0
        %1244 = vmatpush1.msra.mxu0 0.0
        %1245 = vmatprep.subr.mxu0 0.0
        %1246 = vmatpush1.msra.mxu0 0.0
        %1247 = vmatprep.subr.mxu0 0.0
        %1248 = vmatpush1.msra.mxu0 0.0
        %1249 = vmatprep.subr.mxu0 0.0
        %1250 = vmatpush1.msra.mxu0 0.0
        %1251 = vmatprep.subr.mxu0 0.0
        %1252 = vmatpush1.msra.mxu0 0.0
        %1253 = vmatprep.subr.mxu0 0.0
        %1254 = vmatpush1.msra.mxu0 0.0
        %1255 = vmatprep.subr.mxu0 0.0
        %1256 = vmatpush1.msra.mxu0 0.0
        %1257 = vmatprep.subr.mxu0 0.0
        %1258 = vmatpush1.msra.mxu0 0.0
        %1259 = vmatprep.subr.mxu0 0.0
        %1260 = vmatpush1.msra.mxu0 0.0
        %1261 = vmatprep.subr.mxu0 0.0
        %1262 = vmatpush1.msra.mxu0 0.0
        %1263 = vmatprep.subr.mxu0 0.0
        %1264 = vmatpush1.msra.mxu0 0.0
        %1265 = vmatprep.subr.mxu0 0.0
        %1266 = vmatpush1.msra.mxu0 0.0
        %1267 = vmatprep.subr.mxu0 0.0
        %1268 = vmatpush1.msra.mxu0 0.0
        %1269 = vmatprep.subr.mxu0 0.0
        %1270 = vmatpush1.msra.mxu0 0.0
        %1271 = vmatprep.subr.mxu0 0.0
        %1272 = vmatpush1.msra.mxu0 0.0
        %1273 = vmatprep.subr.mxu0 0.0
        %1274 = vmatpush1.msra.mxu0 0.0
        %1275 = vmatprep.subr.mxu0 0.0
        %1276 = vmatpush1.msra.mxu0 0.0
        %1277 = vmatprep.subr.mxu0 0.0
        %1278 = vmatpush1.msra.mxu0 0.0
        %1279 = vmatprep.mubr.f32.mxu0 0.0
        %1280 = vmatmul.mubr.f32.gmra.mrb[0].mxu0 %v1213
        %v1281 = vpop.f32.mrb[0].mxu0
        %v1282 = vadd.f32 0.0, %v1281
        %v1283 = vpop.f32.mrb[0].mxu0
        %v1284 = vadd.f32 0.0, %v1283
        %1285 = vdwg.mxu0
        %v1287 = vsel %vm1211, %v1200, 0
        %1289 = vmatprep.subr.mxu0 %v1199
        %1290 = vmatpush1.msra.mxu0 %v1198
        %1291 = vmatprep.subr.mxu0 0.0
        %1292 = vmatpush1.msra.mxu0 0.0
        %1293 = vmatprep.subr.mxu0 0.0
        %1294 = vmatpush1.msra.mxu0 0.0
        %1295 = vmatprep.subr.mxu0 0.0
        %1296 = vmatpush1.msra.mxu0 0.0
        %1297 = vmatprep.subr.mxu0 0.0
        %1298 = vmatpush1.msra.mxu0 0.0
        %1299 = vmatprep.subr.mxu0 0.0
        %1300 = vmatpush1.msra.mxu0 0.0
        %1301 = vmatprep.subr.mxu0 0.0
        %1302 = vmatpush1.msra.mxu0 0.0
        %1303 = vmatprep.subr.mxu0 0.0
        %1304 = vmatpush1.msra.mxu0 0.0
        %1305 = vmatprep.subr.mxu0 0.0
        %1306 = vmatpush1.msra.mxu0 0.0
        %1307 = vmatprep.subr.mxu0 0.0
        %1308 = vmatpush1.msra.mxu0 0.0
        %1309 = vmatprep.subr.mxu0 0.0
        %1310 = vmatpush1.msra.mxu0 0.0
        %1311 = vmatprep.subr.mxu0 0.0
        %1312 = vmatpush1.msra.mxu0 0.0
        %1313 = vmatprep.subr.mxu0 0.0
        %1314 = vmatpush1.msra.mxu0 0.0
        %1315 = vmatprep.subr.mxu0 0.0
        %1316 = vmatpush1.msra.mxu0 0.0
        %1317 = vmatprep.subr.mxu0 0.0
        %1318 = vmatpush1.msra.mxu0 0.0
        %1319 = vmatprep.subr.mxu0 0.0
        %1320 = vmatpush1.msra.mxu0 0.0
        %1321 = vmatprep.subr.mxu0 0.0
        %1322 = vmatpush1.msra.mxu0 0.0
        %1323 = vmatprep.subr.mxu0 0.0
        %1324 = vmatpush1.msra.mxu0 0.0
        %1325 = vmatprep.subr.mxu0 0.0
        %1326 = vmatpush1.msra.mxu0 0.0
        %1327 = vmatprep.subr.mxu0 0.0
        %1328 = vmatpush1.msra.mxu0 0.0
        %1329 = vmatprep.subr.mxu0 0.0
        %1330 = vmatpush1.msra.mxu0 0.0
        %1331 = vmatprep.subr.mxu0 0.0
        %1332 = vmatpush1.msra.mxu0 0.0
        %1333 = vmatprep.subr.mxu0 0.0
        %1334 = vmatpush1.msra.mxu0 0.0
        %1335 = vmatprep.subr.mxu0 0.0
        %1336 = vmatpush1.msra.mxu0 0.0
        %1337 = vmatprep.subr.mxu0 0.0
        %1338 = vmatpush1.msra.mxu0 0.0
        %1339 = vmatprep.subr.mxu0 0.0
        %1340 = vmatpush1.msra.mxu0 0.0
        %1341 = vmatprep.subr.mxu0 0.0
        %1342 = vmatpush1.msra.mxu0 0.0
        %1343 = vmatprep.subr.mxu0 0.0
        %1344 = vmatpush1.msra.mxu0 0.0
        %1345 = vmatprep.subr.mxu0 0.0
        %1346 = vmatpush1.msra.mxu0 0.0
        %1347 = vmatprep.subr.mxu0 0.0
        %1348 = vmatpush1.msra.mxu0 0.0
        %1349 = vmatprep.subr.mxu0 0.0
        %1350 = vmatpush1.msra.mxu0 0.0
        %1351 = vmatprep.subr.mxu0 0.0
        %1352 = vmatpush1.msra.mxu0 0.0
        %1353 = vmatprep.mubr.f32.mxu0 0.0
        %1354 = vmatmul.mubr.f32.gmra.mrb[0].mxu0 %v1287
        %v1355 = vpop.f32.mrb[0].mxu0
        %v1356 = vadd.f32 %v1282, %v1355
        %v1357 = vpop.f32.mrb[0].mxu0
        %v1358 = vadd.f32 %v1284, %v1357
        %1359 = vdwg.mxu0
        %1360 = vrot.lane.b32.xlu0 %v1190, 15
        %v1361 = vpop.permute.xlu0 %1360
        %1362 = vrot.lane.b32.xlu0 %v1191, 15
        %v1363 = vpop.permute.xlu0 %1362
        %v1364 = vsel %vm468, %v1361, %v1363
        %v1365 = vsel %vm468, %v1363, %v1361
        %v1366 = vmul.f32 %v1365, %v477
        %v1367 = vmul.f32 %v1364, %v481
        %s1368 = scalar_lea.vmem %s3, 8
        %v1369 = vld [vmem:[%s1368] sm:$0xf]
        %v1371 = vsel %vm1211, %v1369, 0
        %1373 = vmatprep.subr.mxu0 %v1367
        %1374 = vmatpush1.msra.mxu0 %v1366
        %1375 = vmatprep.subr.mxu0 0.0
        %1376 = vmatpush1.msra.mxu0 0.0
        %1377 = vmatprep.subr.mxu0 0.0
        %1378 = vmatpush1.msra.mxu0 0.0
        %1379 = vmatprep.subr.mxu0 0.0
        %1380 = vmatpush1.msra.mxu0 0.0
        %1381 = vmatprep.subr.mxu0 0.0
        %1382 = vmatpush1.msra.mxu0 0.0
        %1383 = vmatprep.subr.mxu0 0.0
        %1384 = vmatpush1.msra.mxu0 0.0
        %1385 = vmatprep.subr.mxu0 0.0
        %1386 = vmatpush1.msra.mxu0 0.0
        %1387 = vmatprep.subr.mxu0 0.0
        %1388 = vmatpush1.msra.mxu0 0.0
        %1389 = vmatprep.subr.mxu0 0.0
        %1390 = vmatpush1.msra.mxu0 0.0
        %1391 = vmatprep.subr.mxu0 0.0
        %1392 = vmatpush1.msra.mxu0 0.0
        %1393 = vmatprep.subr.mxu0 0.0
        %1394 = vmatpush1.msra.mxu0 0.0
        %1395 = vmatprep.subr.mxu0 0.0
        %1396 = vmatpush1.msra.mxu0 0.0
        %1397 = vmatprep.subr.mxu0 0.0
        %1398 = vmatpush1.msra.mxu0 0.0
        %1399 = vmatprep.subr.mxu0 0.0
        %1400 = vmatpush1.msra.mxu0 0.0
        %1401 = vmatprep.subr.mxu0 0.0
        %1402 = vmatpush1.msra.mxu0 0.0
        %1403 = vmatprep.subr.mxu0 0.0
        %1404 = vmatpush1.msra.mxu0 0.0
        %1405 = vmatprep.subr.mxu0 0.0
        %1406 = vmatpush1.msra.mxu0 0.0
        %1407 = vmatprep.subr.mxu0 0.0
        %1408 = vmatpush1.msra.mxu0 0.0
        %1409 = vmatprep.subr.mxu0 0.0
        %1410 = vmatpush1.msra.mxu0 0.0
        %1411 = vmatprep.subr.mxu0 0.0
        %1412 = vmatpush1.msra.mxu0 0.0
        %1413 = vmatprep.subr.mxu0 0.0
        %1414 = vmatpush1.msra.mxu0 0.0
        %1415 = vmatprep.subr.mxu0 0.0
        %1416 = vmatpush1.msra.mxu0 0.0
        %1417 = vmatprep.subr.mxu0 0.0
        %1418 = vmatpush1.msra.mxu0 0.0
        %1419 = vmatprep.subr.mxu0 0.0
        %1420 = vmatpush1.msra.mxu0 0.0
        %1421 = vmatprep.subr.mxu0 0.0
        %1422 = vmatpush1.msra.mxu0 0.0
        %1423 = vmatprep.subr.mxu0 0.0
        %1424 = vmatpush1.msra.mxu0 0.0
        %1425 = vmatprep.subr.mxu0 0.0
        %1426 = vmatpush1.msra.mxu0 0.0
        %1427 = vmatprep.subr.mxu0 0.0
        %1428 = vmatpush1.msra.mxu0 0.0
        %1429 = vmatprep.subr.mxu0 0.0
        %1430 = vmatpush1.msra.mxu0 0.0
        %1431 = vmatprep.subr.mxu0 0.0
        %1432 = vmatpush1.msra.mxu0 0.0
        %1433 = vmatprep.subr.mxu0 0.0
        %1434 = vmatpush1.msra.mxu0 0.0
        %1435 = vmatprep.subr.mxu0 0.0
        %1436 = vmatpush1.msra.mxu0 0.0
        %1437 = vmatprep.mubr.f32.mxu0 0.0
        %1438 = vmatmul.mubr.f32.gmra.mrb[0].mxu0 %v1371
        %v1439 = vpop.f32.mrb[0].mxu0
        %v1440 = vadd.f32 0.0, %v1439
        %v1441 = vpop.f32.mrb[0].mxu0
        %v1442 = vadd.f32 0.0, %v1441
        %1443 = vdwg.mxu0
        %v1444 = vadd.f32 %v1356, %v1440
        %v1445 = vadd.f32 %v1358, %v1442
        %1446 = vrot.lane.b32.xlu0 %v1190, 1
        %v1447 = vpop.permute.xlu0 %1446
        %1448 = vrot.lane.b32.xlu0 %v1191, 1
        %v1449 = vpop.permute.xlu0 %1448
        %v1450 = vsel %vm574, %v1447, %v1449
        %v1451 = vsel %vm574, %v1449, %v1447
        %v1452 = vmul.f32 %v1451, %v583
        %v1453 = vmul.f32 %v1450, %v587
        %s1454 = scalar_lea.vmem %s3, 12
        %v1455 = vld [vmem:[%s1454] sm:$0xf]
        %v1457 = vsel %vm1211, %v1455, 0
        %1459 = vmatprep.subr.mxu0 %v1453
        %1460 = vmatpush1.msra.mxu0 %v1452
        %1461 = vmatprep.subr.mxu0 0.0
        %1462 = vmatpush1.msra.mxu0 0.0
        %1463 = vmatprep.subr.mxu0 0.0
        %1464 = vmatpush1.msra.mxu0 0.0
        %1465 = vmatprep.subr.mxu0 0.0
        %1466 = vmatpush1.msra.mxu0 0.0
        %1467 = vmatprep.subr.mxu0 0.0
        %1468 = vmatpush1.msra.mxu0 0.0
        %1469 = vmatprep.subr.mxu0 0.0
        %1470 = vmatpush1.msra.mxu0 0.0
        %1471 = vmatprep.subr.mxu0 0.0
        %1472 = vmatpush1.msra.mxu0 0.0
        %1473 = vmatprep.subr.mxu0 0.0
        %1474 = vmatpush1.msra.mxu0 0.0
        %1475 = vmatprep.subr.mxu0 0.0
        %1476 = vmatpush1.msra.mxu0 0.0
        %1477 = vmatprep.subr.mxu0 0.0
        %1478 = vmatpush1.msra.mxu0 0.0
        %1479 = vmatprep.subr.mxu0 0.0
        %1480 = vmatpush1.msra.mxu0 0.0
        %1481 = vmatprep.subr.mxu0 0.0
        %1482 = vmatpush1.msra.mxu0 0.0
        %1483 = vmatprep.subr.mxu0 0.0
        %1484 = vmatpush1.msra.mxu0 0.0
        %1485 = vmatprep.subr.mxu0 0.0
        %1486 = vmatpush1.msra.mxu0 0.0
        %1487 = vmatprep.subr.mxu0 0.0
        %1488 = vmatpush1.msra.mxu0 0.0
        %1489 = vmatprep.subr.mxu0 0.0
        %1490 = vmatpush1.msra.mxu0 0.0
        %1491 = vmatprep.subr.mxu0 0.0
        %1492 = vmatpush1.msra.mxu0 0.0
        %1493 = vmatprep.subr.mxu0 0.0
        %1494 = vmatpush1.msra.mxu0 0.0
        %1495 = vmatprep.subr.mxu0 0.0
        %1496 = vmatpush1.msra.mxu0 0.0
        %1497 = vmatprep.subr.mxu0 0.0
        %1498 = vmatpush1.msra.mxu0 0.0
        %1499 = vmatprep.subr.mxu0 0.0
        %1500 = vmatpush1.msra.mxu0 0.0
        %1501 = vmatprep.subr.mxu0 0.0
        %1502 = vmatpush1.msra.mxu0 0.0
        %1503 = vmatprep.subr.mxu0 0.0
        %1504 = vmatpush1.msra.mxu0 0.0
        %1505 = vmatprep.subr.mxu0 0.0
        %1506 = vmatpush1.msra.mxu0 0.0
        %1507 = vmatprep.subr.mxu0 0.0
        %1508 = vmatpush1.msra.mxu0 0.0
        %1509 = vmatprep.subr.mxu0 0.0
        %1510 = vmatpush1.msra.mxu0 0.0
        %1511 = vmatprep.subr.mxu0 0.0
        %1512 = vmatpush1.msra.mxu0 0.0
        %1513 = vmatprep.subr.mxu0 0.0
        %1514 = vmatpush1.msra.mxu0 0.0
        %1515 = vmatprep.subr.mxu0 0.0
        %1516 = vmatpush1.msra.mxu0 0.0
        %1517 = vmatprep.subr.mxu0 0.0
        %1518 = vmatpush1.msra.mxu0 0.0
        %1519 = vmatprep.subr.mxu0 0.0
        %1520 = vmatpush1.msra.mxu0 0.0
        %1521 = vmatprep.subr.mxu0 0.0
        %1522 = vmatpush1.msra.mxu0 0.0
        %1523 = vmatprep.mubr.f32.mxu0 0.0
        %1524 = vmatmul.mubr.f32.gmra.mrb[0].mxu0 %v1457
        %v1525 = vpop.f32.mrb[0].mxu0
        %v1526 = vadd.f32 0.0, %v1525
        %v1527 = vpop.f32.mrb[0].mxu0
        %v1528 = vadd.f32 0.0, %v1527
        %1529 = vdwg.mxu0
        %v1530 = vadd.f32 %v1444, %v1526
        %v1531 = vadd.f32 %v1445, %v1528
        %s1532 = scalar_lea.vmem %s3, 16
        %v1533 = vld [vmem:[%s1532] sm:$0xf]
        %v1535 = vsel %vm1211, %v1533, 0
        %1537 = vmatprep.subr.mxu0 %v1191
        %1538 = vmatpush1.msra.mxu0 %v1190
        %1539 = vmatprep.subr.mxu0 0.0
        %1540 = vmatpush1.msra.mxu0 0.0
        %1541 = vmatprep.subr.mxu0 0.0
        %1542 = vmatpush1.msra.mxu0 0.0
        %1543 = vmatprep.subr.mxu0 0.0
        %1544 = vmatpush1.msra.mxu0 0.0
        %1545 = vmatprep.subr.mxu0 0.0
        %1546 = vmatpush1.msra.mxu0 0.0
        %1547 = vmatprep.subr.mxu0 0.0
        %1548 = vmatpush1.msra.mxu0 0.0
        %1549 = vmatprep.subr.mxu0 0.0
        %1550 = vmatpush1.msra.mxu0 0.0
        %1551 = vmatprep.subr.mxu0 0.0
        %1552 = vmatpush1.msra.mxu0 0.0
        %1553 = vmatprep.subr.mxu0 0.0
        %1554 = vmatpush1.msra.mxu0 0.0
        %1555 = vmatprep.subr.mxu0 0.0
        %1556 = vmatpush1.msra.mxu0 0.0
        %1557 = vmatprep.subr.mxu0 0.0
        %1558 = vmatpush1.msra.mxu0 0.0
        %1559 = vmatprep.subr.mxu0 0.0
        %1560 = vmatpush1.msra.mxu0 0.0
        %1561 = vmatprep.subr.mxu0 0.0
        %1562 = vmatpush1.msra.mxu0 0.0
        %1563 = vmatprep.subr.mxu0 0.0
        %1564 = vmatpush1.msra.mxu0 0.0
        %1565 = vmatprep.subr.mxu0 0.0
        %1566 = vmatpush1.msra.mxu0 0.0
        %1567 = vmatprep.subr.mxu0 0.0
        %1568 = vmatpush1.msra.mxu0 0.0
        %1569 = vmatprep.subr.mxu0 0.0
        %1570 = vmatpush1.msra.mxu0 0.0
        %1571 = vmatprep.subr.mxu0 0.0
        %1572 = vmatpush1.msra.mxu0 0.0
        %1573 = vmatprep.subr.mxu0 0.0
        %1574 = vmatpush1.msra.mxu0 0.0
        %1575 = vmatprep.subr.mxu0 0.0
        %1576 = vmatpush1.msra.mxu0 0.0
        %1577 = vmatprep.subr.mxu0 0.0
        %1578 = vmatpush1.msra.mxu0 0.0
        %1579 = vmatprep.subr.mxu0 0.0
        %1580 = vmatpush1.msra.mxu0 0.0
        %1581 = vmatprep.subr.mxu0 0.0
        %1582 = vmatpush1.msra.mxu0 0.0
        %1583 = vmatprep.subr.mxu0 0.0
        %1584 = vmatpush1.msra.mxu0 0.0
        %1585 = vmatprep.subr.mxu0 0.0
        %1586 = vmatpush1.msra.mxu0 0.0
        %1587 = vmatprep.subr.mxu0 0.0
        %1588 = vmatpush1.msra.mxu0 0.0
        %1589 = vmatprep.subr.mxu0 0.0
        %1590 = vmatpush1.msra.mxu0 0.0
        %1591 = vmatprep.subr.mxu0 0.0
        %1592 = vmatpush1.msra.mxu0 0.0
        %1593 = vmatprep.subr.mxu0 0.0
        %1594 = vmatpush1.msra.mxu0 0.0
        %1595 = vmatprep.subr.mxu0 0.0
        %1596 = vmatpush1.msra.mxu0 0.0
        %1597 = vmatprep.subr.mxu0 0.0
        %1598 = vmatpush1.msra.mxu0 0.0
        %1599 = vmatprep.subr.mxu0 0.0
        %1600 = vmatpush1.msra.mxu0 0.0
        %1601 = vmatprep.mubr.f32.mxu0 0.0
        %1602 = vmatmul.mubr.f32.gmra.mrb[0].mxu0 %v1535
        %v1603 = vpop.f32.mrb[0].mxu0
        %v1604 = vadd.f32 0.0, %v1603
        %v1605 = vpop.f32.mrb[0].mxu0
        %v1606 = vadd.f32 0.0, %v1605
        %1607 = vdwg.mxu0
        %v1608 = vadd.f32 %v1530, %v1604
        %v1609 = vadd.f32 %v1531, %v1606
        %1610 = vrot.lane.b32.xlu0 %v1190, 127
        %v1611 = vpop.permute.xlu0 %1610
        %1612 = vrot.lane.b32.xlu0 %v1191, 127
        %v1613 = vpop.permute.xlu0 %1612
        %v1614 = vsel %vm762, %v1611, %v1613
        %v1615 = vsel %vm762, %v1613, %v1611
        %v1616 = vmul.f32 %v1614, %v771
        %v1617 = vmul.f32 %v1615, %v775
        %s1618 = scalar_lea.vmem %s3, 20
        %v1619 = vld [vmem:[%s1618] sm:$0xf]
        %v1621 = vsel %vm1211, %v1619, 0
        %1623 = vmatprep.subr.mxu0 %v1617
        %1624 = vmatpush1.msra.mxu0 %v1616
        %1625 = vmatprep.subr.mxu0 0.0
        %1626 = vmatpush1.msra.mxu0 0.0
        %1627 = vmatprep.subr.mxu0 0.0
        %1628 = vmatpush1.msra.mxu0 0.0
        %1629 = vmatprep.subr.mxu0 0.0
        %1630 = vmatpush1.msra.mxu0 0.0
        %1631 = vmatprep.subr.mxu0 0.0
        %1632 = vmatpush1.msra.mxu0 0.0
        %1633 = vmatprep.subr.mxu0 0.0
        %1634 = vmatpush1.msra.mxu0 0.0
        %1635 = vmatprep.subr.mxu0 0.0
        %1636 = vmatpush1.msra.mxu0 0.0
        %1637 = vmatprep.subr.mxu0 0.0
        %1638 = vmatpush1.msra.mxu0 0.0
        %1639 = vmatprep.subr.mxu0 0.0
        %1640 = vmatpush1.msra.mxu0 0.0
        %1641 = vmatprep.subr.mxu0 0.0
        %1642 = vmatpush1.msra.mxu0 0.0
        %1643 = vmatprep.subr.mxu0 0.0
        %1644 = vmatpush1.msra.mxu0 0.0
        %1645 = vmatprep.subr.mxu0 0.0
        %1646 = vmatpush1.msra.mxu0 0.0
        %1647 = vmatprep.subr.mxu0 0.0
        %1648 = vmatpush1.msra.mxu0 0.0
        %1649 = vmatprep.subr.mxu0 0.0
        %1650 = vmatpush1.msra.mxu0 0.0
        %1651 = vmatprep.subr.mxu0 0.0
        %1652 = vmatpush1.msra.mxu0 0.0
        %1653 = vmatprep.subr.mxu0 0.0
        %1654 = vmatpush1.msra.mxu0 0.0
        %1655 = vmatprep.subr.mxu0 0.0
        %1656 = vmatpush1.msra.mxu0 0.0
        %1657 = vmatprep.subr.mxu0 0.0
        %1658 = vmatpush1.msra.mxu0 0.0
        %1659 = vmatprep.subr.mxu0 0.0
        %1660 = vmatpush1.msra.mxu0 0.0
        %1661 = vmatprep.subr.mxu0 0.0
        %1662 = vmatpush1.msra.mxu0 0.0
        %1663 = vmatprep.subr.mxu0 0.0
        %1664 = vmatpush1.msra.mxu0 0.0
        %1665 = vmatprep.subr.mxu0 0.0
        %1666 = vmatpush1.msra.mxu0 0.0
        %1667 = vmatprep.subr.mxu0 0.0
        %1668 = vmatpush1.msra.mxu0 0.0
        %1669 = vmatprep.subr.mxu0 0.0
        %1670 = vmatpush1.msra.mxu0 0.0
        %1671 = vmatprep.subr.mxu0 0.0
        %1672 = vmatpush1.msra.mxu0 0.0
        %1673 = vmatprep.subr.mxu0 0.0
        %1674 = vmatpush1.msra.mxu0 0.0
        %1675 = vmatprep.subr.mxu0 0.0
        %1676 = vmatpush1.msra.mxu0 0.0
        %1677 = vmatprep.subr.mxu0 0.0
        %1678 = vmatpush1.msra.mxu0 0.0
        %1679 = vmatprep.subr.mxu0 0.0
        %1680 = vmatpush1.msra.mxu0 0.0
        %1681 = vmatprep.subr.mxu0 0.0
        %1682 = vmatpush1.msra.mxu0 0.0
        %1683 = vmatprep.subr.mxu0 0.0
        %1684 = vmatpush1.msra.mxu0 0.0
        %1685 = vmatprep.subr.mxu0 0.0
        %1686 = vmatpush1.msra.mxu0 0.0
        %1687 = vmatprep.mubr.f32.mxu0 0.0
        %1688 = vmatmul.mubr.f32.gmra.mrb[0].mxu0 %v1621
        %v1689 = vpop.f32.mrb[0].mxu0
        %v1690 = vadd.f32 0.0, %v1689
        %v1691 = vpop.f32.mrb[0].mxu0
        %v1692 = vadd.f32 0.0, %v1691
        %1693 = vdwg.mxu0
        %v1694 = vadd.f32 %v1608, %v1690
        %v1695 = vadd.f32 %v1609, %v1692
        %1696 = vrot.lane.b32.xlu0 %v1190, 113
        %v1697 = vpop.permute.xlu0 %1696
        %1698 = vrot.lane.b32.xlu0 %v1191, 113
        %v1699 = vpop.permute.xlu0 %1698
        %v1700 = vsel %vm868, %v1697, %v1699
        %v1701 = vsel %vm868, %v1699, %v1697
        %v1702 = vmul.f32 %v1700, %v877
        %v1703 = vmul.f32 %v1701, %v881
        %s1704 = scalar_lea.vmem %s3, 24
        %v1705 = vld [vmem:[%s1704] sm:$0xf]
        %v1707 = vsel %vm1211, %v1705, 0
        %1709 = vmatprep.subr.mxu0 %v1703
        %1710 = vmatpush1.msra.mxu0 %v1702
        %1711 = vmatprep.subr.mxu0 0.0
        %1712 = vmatpush1.msra.mxu0 0.0
        %1713 = vmatprep.subr.mxu0 0.0
        %1714 = vmatpush1.msra.mxu0 0.0
        %1715 = vmatprep.subr.mxu0 0.0
        %1716 = vmatpush1.msra.mxu0 0.0
        %1717 = vmatprep.subr.mxu0 0.0
        %1718 = vmatpush1.msra.mxu0 0.0
        %1719 = vmatprep.subr.mxu0 0.0
        %1720 = vmatpush1.msra.mxu0 0.0
        %1721 = vmatprep.subr.mxu0 0.0
        %1722 = vmatpush1.msra.mxu0 0.0
        %1723 = vmatprep.subr.mxu0 0.0
        %1724 = vmatpush1.msra.mxu0 0.0
        %1725 = vmatprep.subr.mxu0 0.0
        %1726 = vmatpush1.msra.mxu0 0.0
        %1727 = vmatprep.subr.mxu0 0.0
        %1728 = vmatpush1.msra.mxu0 0.0
        %1729 = vmatprep.subr.mxu0 0.0
        %1730 = vmatpush1.msra.mxu0 0.0
        %1731 = vmatprep.subr.mxu0 0.0
        %1732 = vmatpush1.msra.mxu0 0.0
        %1733 = vmatprep.subr.mxu0 0.0
        %1734 = vmatpush1.msra.mxu0 0.0
        %1735 = vmatprep.subr.mxu0 0.0
        %1736 = vmatpush1.msra.mxu0 0.0
        %1737 = vmatprep.subr.mxu0 0.0
        %1738 = vmatpush1.msra.mxu0 0.0
        %1739 = vmatprep.subr.mxu0 0.0
        %1740 = vmatpush1.msra.mxu0 0.0
        %1741 = vmatprep.subr.mxu0 0.0
        %1742 = vmatpush1.msra.mxu0 0.0
        %1743 = vmatprep.subr.mxu0 0.0
        %1744 = vmatpush1.msra.mxu0 0.0
        %1745 = vmatprep.subr.mxu0 0.0
        %1746 = vmatpush1.msra.mxu0 0.0
        %1747 = vmatprep.subr.mxu0 0.0
        %1748 = vmatpush1.msra.mxu0 0.0
        %1749 = vmatprep.subr.mxu0 0.0
        %1750 = vmatpush1.msra.mxu0 0.0
        %1751 = vmatprep.subr.mxu0 0.0
        %1752 = vmatpush1.msra.mxu0 0.0
        %1753 = vmatprep.subr.mxu0 0.0
        %1754 = vmatpush1.msra.mxu0 0.0
        %1755 = vmatprep.subr.mxu0 0.0
        %1756 = vmatpush1.msra.mxu0 0.0
        %1757 = vmatprep.subr.mxu0 0.0
        %1758 = vmatpush1.msra.mxu0 0.0
        %1759 = vmatprep.subr.mxu0 0.0
        %1760 = vmatpush1.msra.mxu0 0.0
        %1761 = vmatprep.subr.mxu0 0.0
        %1762 = vmatpush1.msra.mxu0 0.0
        %1763 = vmatprep.subr.mxu0 0.0
        %1764 = vmatpush1.msra.mxu0 0.0
        %1765 = vmatprep.subr.mxu0 0.0
        %1766 = vmatpush1.msra.mxu0 0.0
        %1767 = vmatprep.subr.mxu0 0.0
        %1768 = vmatpush1.msra.mxu0 0.0
        %1769 = vmatprep.subr.mxu0 0.0
        %1770 = vmatpush1.msra.mxu0 0.0
        %1771 = vmatprep.subr.mxu0 0.0
        %1772 = vmatpush1.msra.mxu0 0.0
        %1773 = vmatprep.mubr.f32.mxu0 0.0
        %1774 = vmatmul.mubr.f32.gmra.mrb[0].mxu0 %v1707
        %v1775 = vpop.f32.mrb[0].mxu0
        %v1776 = vadd.f32 0.0, %v1775
        %v1777 = vpop.f32.mrb[0].mxu0
        %v1778 = vadd.f32 0.0, %v1777
        %1779 = vdwg.mxu0
        %v1780 = vadd.f32 %v1694, %v1776
        %v1781 = vadd.f32 %v1695, %v1778
        %1782 = vrot.lane.b32.xlu0 %v1190, 112
        %v1783 = vpop.permute.xlu0 %1782
        %1784 = vrot.lane.b32.xlu0 %v1191, 112
        %v1785 = vpop.permute.xlu0 %1784
        %v1786 = vsel %vm974, %v1783, %v1785
        %v1787 = vsel %vm974, %v1785, %v1783
        %v1788 = vmul.f32 %v1786, %v983
        %v1789 = vmul.f32 %v1787, %v987
        %s1790 = scalar_lea.vmem %s3, 28
        %v1791 = vld [vmem:[%s1790] sm:$0xf]
        %v1793 = vsel %vm1211, %v1791, 0
        %1795 = vmatprep.subr.mxu0 %v1789
        %1796 = vmatpush1.msra.mxu0 %v1788
        %1797 = vmatprep.subr.mxu0 0.0
        %1798 = vmatpush1.msra.mxu0 0.0
        %1799 = vmatprep.subr.mxu0 0.0
        %1800 = vmatpush1.msra.mxu0 0.0
        %1801 = vmatprep.subr.mxu0 0.0
        %1802 = vmatpush1.msra.mxu0 0.0
        %1803 = vmatprep.subr.mxu0 0.0
        %1804 = vmatpush1.msra.mxu0 0.0
        %1805 = vmatprep.subr.mxu0 0.0
        %1806 = vmatpush1.msra.mxu0 0.0
        %1807 = vmatprep.subr.mxu0 0.0
        %1808 = vmatpush1.msra.mxu0 0.0
        %1809 = vmatprep.subr.mxu0 0.0
        %1810 = vmatpush1.msra.mxu0 0.0
        %1811 = vmatprep.subr.mxu0 0.0
        %1812 = vmatpush1.msra.mxu0 0.0
        %1813 = vmatprep.subr.mxu0 0.0
        %1814 = vmatpush1.msra.mxu0 0.0
        %1815 = vmatprep.subr.mxu0 0.0
        %1816 = vmatpush1.msra.mxu0 0.0
        %1817 = vmatprep.subr.mxu0 0.0
        %1818 = vmatpush1.msra.mxu0 0.0
        %1819 = vmatprep.subr.mxu0 0.0
        %1820 = vmatpush1.msra.mxu0 0.0
        %1821 = vmatprep.subr.mxu0 0.0
        %1822 = vmatpush1.msra.mxu0 0.0
        %1823 = vmatprep.subr.mxu0 0.0
        %1824 = vmatpush1.msra.mxu0 0.0
        %1825 = vmatprep.subr.mxu0 0.0
        %1826 = vmatpush1.msra.mxu0 0.0
        %1827 = vmatprep.subr.mxu0 0.0
        %1828 = vmatpush1.msra.mxu0 0.0
        %1829 = vmatprep.subr.mxu0 0.0
        %1830 = vmatpush1.msra.mxu0 0.0
        %1831 = vmatprep.subr.mxu0 0.0
        %1832 = vmatpush1.msra.mxu0 0.0
        %1833 = vmatprep.subr.mxu0 0.0
        %1834 = vmatpush1.msra.mxu0 0.0
        %1835 = vmatprep.subr.mxu0 0.0
        %1836 = vmatpush1.msra.mxu0 0.0
        %1837 = vmatprep.subr.mxu0 0.0
        %1838 = vmatpush1.msra.mxu0 0.0
        %1839 = vmatprep.subr.mxu0 0.0
        %1840 = vmatpush1.msra.mxu0 0.0
        %1841 = vmatprep.subr.mxu0 0.0
        %1842 = vmatpush1.msra.mxu0 0.0
        %1843 = vmatprep.subr.mxu0 0.0
        %1844 = vmatpush1.msra.mxu0 0.0
        %1845 = vmatprep.subr.mxu0 0.0
        %1846 = vmatpush1.msra.mxu0 0.0
        %1847 = vmatprep.subr.mxu0 0.0
        %1848 = vmatpush1.msra.mxu0 0.0
        %1849 = vmatprep.subr.mxu0 0.0
        %1850 = vmatpush1.msra.mxu0 0.0
        %1851 = vmatprep.subr.mxu0 0.0
        %1852 = vmatpush1.msra.mxu0 0.0
        %1853 = vmatprep.subr.mxu0 0.0
        %1854 = vmatpush1.msra.mxu0 0.0
        %1855 = vmatprep.subr.mxu0 0.0
        %1856 = vmatpush1.msra.mxu0 0.0
        %1857 = vmatprep.subr.mxu0 0.0
        %1858 = vmatpush1.msra.mxu0 0.0
        %1859 = vmatprep.mubr.f32.mxu0 0.0
        %1860 = vmatmul.mubr.f32.gmra.mrb[0].mxu0 %v1793
        %v1861 = vpop.f32.mrb[0].mxu0
        %v1862 = vadd.f32 0.0, %v1861
        %v1863 = vpop.f32.mrb[0].mxu0
        %v1864 = vadd.f32 0.0, %v1863
        %1865 = vdwg.mxu0
        %v1866 = vadd.f32 %v1780, %v1862
        %v1867 = vadd.f32 %v1781, %v1864
        %1868 = vrot.lane.b32.xlu0 %v1190, 111
        %v1869 = vpop.permute.xlu0 %1868
        %1870 = vrot.lane.b32.xlu0 %v1191, 111
        %v1871 = vpop.permute.xlu0 %1870
        %v1872 = vsel %vm1080, %v1869, %v1871
        %v1873 = vsel %vm1080, %v1871, %v1869
        %v1874 = vmul.f32 %v1872, %v1089
        %v1875 = vmul.f32 %v1873, %v1093
        %s1876 = scalar_lea.vmem %s3, 32
        %v1877 = vld [vmem:[%s1876] sm:$0xf]
        %v1879 = vsel %vm1211, %v1877, 0
        %1881 = vmatprep.subr.mxu0 %v1875
        %1882 = vmatpush1.msra.mxu0 %v1874
        %1883 = vmatprep.subr.mxu0 0.0
        %1884 = vmatpush1.msra.mxu0 0.0
        %1885 = vmatprep.subr.mxu0 0.0
        %1886 = vmatpush1.msra.mxu0 0.0
        %1887 = vmatprep.subr.mxu0 0.0
        %1888 = vmatpush1.msra.mxu0 0.0
        %1889 = vmatprep.subr.mxu0 0.0
        %1890 = vmatpush1.msra.mxu0 0.0
        %1891 = vmatprep.subr.mxu0 0.0
        %1892 = vmatpush1.msra.mxu0 0.0
        %1893 = vmatprep.subr.mxu0 0.0
        %1894 = vmatpush1.msra.mxu0 0.0
        %1895 = vmatprep.subr.mxu0 0.0
        %1896 = vmatpush1.msra.mxu0 0.0
        %1897 = vmatprep.subr.mxu0 0.0
        %1898 = vmatpush1.msra.mxu0 0.0
        %1899 = vmatprep.subr.mxu0 0.0
        %1900 = vmatpush1.msra.mxu0 0.0
        %1901 = vmatprep.subr.mxu0 0.0
        %1902 = vmatpush1.msra.mxu0 0.0
        %1903 = vmatprep.subr.mxu0 0.0
        %1904 = vmatpush1.msra.mxu0 0.0
        %1905 = vmatprep.subr.mxu0 0.0
        %1906 = vmatpush1.msra.mxu0 0.0
        %1907 = vmatprep.subr.mxu0 0.0
        %1908 = vmatpush1.msra.mxu0 0.0
        %1909 = vmatprep.subr.mxu0 0.0
        %1910 = vmatpush1.msra.mxu0 0.0
        %1911 = vmatprep.subr.mxu0 0.0
        %1912 = vmatpush1.msra.mxu0 0.0
        %1913 = vmatprep.subr.mxu0 0.0
        %1914 = vmatpush1.msra.mxu0 0.0
        %1915 = vmatprep.subr.mxu0 0.0
        %1916 = vmatpush1.msra.mxu0 0.0
        %1917 = vmatprep.subr.mxu0 0.0
        %1918 = vmatpush1.msra.mxu0 0.0
        %1919 = vmatprep.subr.mxu0 0.0
        %1920 = vmatpush1.msra.mxu0 0.0
        %1921 = vmatprep.subr.mxu0 0.0
        %1922 = vmatpush1.msra.mxu0 0.0
        %1923 = vmatprep.subr.mxu0 0.0
        %1924 = vmatpush1.msra.mxu0 0.0
        %1925 = vmatprep.subr.mxu0 0.0
        %1926 = vmatpush1.msra.mxu0 0.0
        %1927 = vmatprep.subr.mxu0 0.0
        %1928 = vmatpush1.msra.mxu0 0.0
        %1929 = vmatprep.subr.mxu0 0.0
        %1930 = vmatpush1.msra.mxu0 0.0
        %1931 = vmatprep.subr.mxu0 0.0
        %1932 = vmatpush1.msra.mxu0 0.0
        %1933 = vmatprep.subr.mxu0 0.0
        %1934 = vmatpush1.msra.mxu0 0.0
        %1935 = vmatprep.subr.mxu0 0.0
        %1936 = vmatpush1.msra.mxu0 0.0
        %1937 = vmatprep.subr.mxu0 0.0
        %1938 = vmatpush1.msra.mxu0 0.0
        %1939 = vmatprep.subr.mxu0 0.0
        %1940 = vmatpush1.msra.mxu0 0.0
        %1941 = vmatprep.subr.mxu0 0.0
        %1942 = vmatpush1.msra.mxu0 0.0
        %1943 = vmatprep.subr.mxu0 0.0
        %1944 = vmatpush1.msra.mxu0 0.0
        %1945 = vmatprep.mubr.f32.mxu0 0.0
        %1946 = vmatmul.mubr.f32.gmra.mrb[0].mxu0 %v1879
        %v1947 = vpop.f32.mrb[0].mxu0
        %v1948 = vadd.f32 0.0, %v1947
        %v1949 = vpop.f32.mrb[0].mxu0
        %v1950 = vadd.f32 0.0, %v1949
        %1951 = vdwg.mxu0
        %v1952 = vadd.f32 %v1866, %v1948
        %v1953 = vadd.f32 %v1867, %v1950
        %v1954 = vld [vmem:[%s4] sm:$0xf]
        %1956 = vset.pattern.permute.xlu0 0
        %1957 = vperm.xlu0 %1956, %v1954
        %v1958 = vpop.permute.xlu0 %1957
        %v1960 = vadd.f32 %v1952, %v1958
        %v1961 = vadd.f32 %v1953, %v1958
        %v1962 = vmax.f32 %v1960, 0.0
        %v1963 = vmax.f32 %v1961, 0.0
        %v1966 = vcombine.low %v1962, %v1963
        %1968 = vst [vmem:[%s244] sm:$0xff] %v1966
        %s1969 = sand.u32 %s159, 1
        %s1970 = scalar_lea.sflag [#allocation3], %s1969
        %s1971 = sand.u32 %s159, 1
        %s1972 = smul.addr %s1971, 8
        %s1973 = scalar_lea.vmem [#allocation2], %s1972
        // Predicated region
        $region45: #{tpu_custom_call.1} parent=43 // pred_check
          %p1974 = pneg %p169
        $region46: #{tpu_custom_call.1} parent=43 // pred_check_branch
          %1976 = sbr.rel (%p1974) target = $region48
        $region47: #{tpu_custom_call.1} parent=43 // pred_region
          %s1978 = ssub.s32 128, 128
          %1979 = vsyncadd %s1970, %s1978
          %s1980 = smul.addr %s20, 2
          %s1981 = smul.addr %s1980, 64
          %s1982 = scalar_lea.hbm %s6, %s1981
          %s1984 = sshll.u32 %s1973, 4
          %s1985 = int_to_ptr.vmem [resolvable:$true] %s1984
          %1987 = dma.vmem_to_hbm [thread:$0]  %s1985, 128, %s1982, %s1970
        $region48: #{tpu_custom_call.1} parent=43 // pred_fallthru
          _
      $region44: #{tpu_custom_call.1} parent=5 // pred_fallthru
        _
      %p1988 = scmp.le.s32.totalorder 2, %s15
      // Predicated region
      $region49: #{tpu_custom_call.1} parent=5 // pred_check
        %p1989 = pneg %p1988
      $region50: #{tpu_custom_call.1} parent=5 // pred_check_branch
        %1991 = sbr.rel (%p1989) target = $region52
      $region51: #{tpu_custom_call.1} parent=5 // pred_region
        %s1992 = ssub.s32 %s15, 2
        // Predicated region
        $region53: #{tpu_custom_call.1} parent=51 // pred_check
          %p1993 = pneg %p175
        $region54: #{tpu_custom_call.1} parent=51 // pred_check_branch
          %1995 = sbr.rel (%p1993) target = $region56
        $region55: #{tpu_custom_call.1} parent=51 // pred_region
          %s1996 = sand.u32 %s160, 1
          %s1997 = scalar_lea.sflag [#allocation3], %s1996
          %s1998 = sand.u32 %s160, 1
          %s1999 = smul.addr %s1998, 8
          %s2000 = scalar_lea.vmem [#allocation2], %s1999
          %2001 = dma.done %s1997, 128
        $region56: #{tpu_custom_call.1} parent=51 // pred_fallthru
          _
      $region52: #{tpu_custom_call.1} parent=5 // pred_fallthru
        _
    $region6: #{tpu_custom_call.1} parent=1 // loop_footer
      %s19 = sadd.s32 1, %s15
    $region7: #{tpu_custom_call.1} parent=1 // loop_footer_branch
      %14 = sbr.rel target = $region3
    $region8: #{tpu_custom_call.1} parent=1 // loop_exit
      _
    %2002 = vsyncpa [#allocation3], 1
    %s2003 = scalar_lea.sflag [#allocation3], 1
    %2004 = vsyncpa %s2003, 1

</llo_original>
